<compile_context>
chip_gen: v6e
topology: v6e:2x2x1
jax: 0.10.0
libtpu: 0.0.40
codegen_flags: <defaults>
</compile_context>

<pallas_src>
import math
import numpy as np
import jax
import jax.numpy as jnp
from jax.experimental import pallas as pl
from jax.experimental.pallas import tpu as pltpu


# ------------------------------------------------------------------ config ---
BACKBONES = {
    'resnet18': {64: 56, 128: 28, 256: 14, 512: 7},
    'resnet34': {64: 56, 128: 28, 256: 14, 512: 7},
    'resnet50': {256: 56, 512: 28, 1024: 14, 2048: 7},
}


def get_freq_indices(method):
    assert method in ['top1', 'top2', 'top4', 'top8', 'top16', 'top32']
    num_freq = int(method[3:])
    all_top_indices_x = [0, 0, 6, 0, 0, 1, 1, 4, 5, 1, 3, 0, 0, 0, 3, 2,
                         4, 6, 3, 5, 5, 2, 6, 5, 5, 3, 3, 4, 2, 2, 6, 1]
    all_top_indices_y = [0, 1, 0, 5, 2, 0, 2, 0, 0, 6, 0, 4, 6, 3, 5, 2,
                         6, 3, 3, 3, 5, 1, 1, 2, 4, 2, 1, 1, 3, 0, 5, 3]
    return all_top_indices_x[:num_freq], all_top_indices_y[:num_freq]


def build_filter(pos, freq, POS):
    r = math.cos(math.pi * freq * (pos + 0.5) / POS) / math.sqrt(POS)
    return r if freq == 0 else r * math.sqrt(2)


def get_dct_filter(tile_x, tile_y, mapper_x, mapper_y, in_channels):
    dct = np.zeros((in_channels, tile_x, tile_y), dtype=np.float32)
    c_part = in_channels // len(mapper_x)
    for i, (u_x, v_y) in enumerate(zip(mapper_x, mapper_y)):
        for t_x in range(tile_x):
            for t_y in range(tile_y):
                dct[i * c_part:(i + 1) * c_part, t_x, t_y] = (
                    build_filter(t_x, u_x, tile_x) * build_filter(t_y, v_y, tile_y))
    return dct


# ------------------------------------------------------------------ kernel ---
def fca_kernel(x_ref, wdct_ref, w1t_ref, b1_ref, w2t_ref, b2_ref, out_ref):
    # x_ref   : (nb, C, HW) native-NCHW block (C on sublanes, HW on lanes)
    # wdct_ref: (C, HW)     effective DCT filter (adaptive pooling folded in)
    # w1t_ref : (C, Cr), b1_ref: (1, Cr)   first linear (pre-transposed)
    # w2t_ref : (Cr, C), b2_ref: (1, C)    second linear (pre-transposed)

    # MultiSpectralDCTLayer: multiply + spatial (lane) reduction, f32 accumulate.
    # Note: x is NOT kept live as an f32 copy across the FC chain; the ref is
    # re-read in native dtype for the final rescale.
    y = jnp.sum(x_ref[...].astype(jnp.float32) * wdct_ref[...][None, :, :],
                axis=2)                                                # (nb, C)

    # fc: Linear -> ReLU -> Linear -> Sigmoid (MXU matmuls, f32 accumulate).
    h1 = jnp.dot(y, w1t_ref[...], preferred_element_type=jnp.float32) + b1_ref[...]
    h1 = jnp.maximum(h1, 0.0)                                          # (nb, Cr)
    s_pre = jnp.dot(h1, w2t_ref[...], preferred_element_type=jnp.float32) + b2_ref[...]
    # sigmoid via EUP exp + approximate EUP reciprocal (no VALU divide).
    s = pl.reciprocal(1.0 + jnp.exp(-s_pre), approx=True)              # (nb, C)

    # Channel-wise rescale of the original activation in its native dtype.
    out_ref[...] = x_ref[...] * s.astype(out_ref.dtype)[:, :, None]


# ---------------------------------------------------- one-time per-layer prep ---
def make_fca_params(wdct, w1, b1, w2, b2, dct_h, dct_w, H, W):
    """Hoisted out of the hot path: effective DCT filter (with the adaptive
    pooling fold), pre-transposed FC weights and lane-dense bias rows."""
    C = wdct.shape[0]
    Cr = w1.shape[0]
    if (H, W) != (dct_h, dct_w):
        # Fold adaptive_avg_pool2d into the filter (pool + multiply is linear):
        # w_eff[c, h, w] = wdct[c, h // bh, w // bw] / (bh * bw)
        # TODO(synk): general non-divisible adaptive_avg_pool2d bins not implemented
        assert H % dct_h == 0 and W % dct_w == 0
        bh, bw = H // dct_h, W // dct_w
        w_eff = jnp.repeat(jnp.repeat(wdct, bh, axis=1), bw, axis=2) / float(bh * bw)
    else:
        w_eff = wdct
    return dict(
        w_eff=w_eff.reshape(C, H * W).astype(jnp.float32),   # (C, HW), NCHW-native
        w1t=jnp.transpose(w1).astype(jnp.float32),            # (C, Cr)
        b1=b1.reshape(1, Cr).astype(jnp.float32),
        w2t=jnp.transpose(w2).astype(jnp.float32),             # (Cr, C)
        b2=b2.reshape(1, C).astype(jnp.float32),
    )


# ------------------------------------------------------------ tiling helper ---
def _pick_nb_and_vmem(N, C, HW, Cr, x_dtype, n_block=None):
    """VMEM-budgeted batch-block size + explicit scoped-VMEM limit."""
    isz = jnp.dtype(x_dtype).itemsize
    # Per-sample VMEM: double-buffered x tile + double-buffered out tile + one
    # f32 temp for the multiply/reduce.
    per_sample = C * HW * (2 * isz + 2 * isz + 4)
    # Grid-invariant operands (filter, FC weights, biases), default 2 buffers.
    fixed = 2 * 4 * (C * HW + 2 * C * Cr + C + Cr) + (1 << 20)
    try:
        cap = int(getattr(pltpu.get_tpu_info(), "vmem_capacity_bytes", 64 << 20))
    except Exception:                                  # pragma: no cover
        cap = 64 << 20                                 # conservative (v7x per-core)
    budget = int(0.70 * cap)                           # headroom below physical VMEM
    nb_vmem = max(1, (budget - fixed) // per_sample)
    if n_block is None:
        # >= ~4 grid steps (2 per TensorCore on v7x) so DMA/compute can overlap.
        nb = int(min(N, nb_vmem, max(1, N // 4)))
        if nb >= 8:
            nb = (nb // 8) * 8                         # full-sublane (nb, C) tiles
    else:
        nb = int(max(1, min(n_block, N, nb_vmem)))
    need = nb * per_sample + fixed
    vmem_limit = int(min(max(need * 5 // 4, 32 << 20), int(0.9 * cap)))
    return nb, vmem_limit


# ----------------------------------------------------------------- wrapper ---
def fca_forward(x, params, *, n_block=None, donate_x=False):
    N, C, H, W = x.shape
    HW = H * W
    w_eff, w1t, b1, w2t, b2 = (params["w_eff"], params["w1t"], params["b1"],
                               params["w2t"], params["b2"])
    assert w_eff.shape == (C, HW), "params were built for a different (C, H, W)"
    Cr = w1t.shape[1]

    nb, vmem_limit = _pick_nb_and_vmem(N, C, HW, Cr, x.dtype, n_block)

    # NCHW is kept as-is: (N, C, H, W) -> (N, C, HW) is a free (view) reshape,
    # so the kernel is the only HBM read/write of x — no wrapper transposes.
    x_l = x.reshape(N, C, HW)

    out = pl.pallas_call(
        fca_kernel,
        out_shape=jax.ShapeDtypeStruct((N, C, HW), x.dtype),
        grid_spec=pltpu.PrefetchScalarGridSpec(
            num_scalar_prefetch=0,
            grid=(pl.cdiv(N, nb),),                    # partial tail block is OK
            in_specs=[
                pl.BlockSpec((nb, C, HW), lambda n: (n, 0, 0)),   # x (NCHW-native)
                pl.BlockSpec((C, HW), lambda n: (0, 0)),          # effective DCT filter
                pl.BlockSpec((C, Cr), lambda n: (0, 0)),          # W1^T
                pl.BlockSpec((1, Cr), lambda n: (0, 0)),          # b1 (row)
                pl.BlockSpec((Cr, C), lambda n: (0, 0)),          # W2^T
                pl.BlockSpec((1, C), lambda n: (0, 0)),           # b2 (row)
            ],
            out_specs=pl.BlockSpec((nb, C, HW), lambda n: (n, 0, 0)),
        ),
        compiler_params=pltpu.CompilerParams(
            dimension_semantics=("parallel",),
            vmem_limit_bytes=vmem_limit),
        input_output_aliases=({0: 0} if donate_x else {}),
    )(x_l, w_eff, w1t, b1, w2t, b2)

    return out.reshape(N, C, H, W)


# --------------------------------------------------------------- reference ---
def ref_forward(x, wdct, w1, b1, w2, b2, dct_h, dct_w):
    N, C, H, W = x.shape
    if (H, W) != (dct_h, dct_w):
        xp = x.reshape(N, C, dct_h, H // dct_h, dct_w, W // dct_w).mean(axis=(3, 5))
    else:
        xp = x
    y = jnp.sum(xp * wdct[None], axis=(2, 3))             # (N, C)
    h1 = jnp.maximum(y @ w1.T + b1, 0.0)
    s = jax.nn.sigmoid(h1 @ w2.T + b2)
    return x * s[:, :, None, None]


# -------------------------------------------------------------------- main ---
if __name__ == "__main__":
    # fca_module(in_channels=512, reduction=4, backbone='resnet18')
    in_channels = 512
    reduction = 4
    backbone = 'resnet18'
    dct_hw = BACKBONES[backbone][in_channels]              # 7 for the 512-ch stage
    Cr = in_channels // reduction

    key = jax.random.PRNGKey(0)
    kx, k1, k2, k3, k4, kx2, kx3, kx4 = jax.random.split(key, 8)

    w1 = jax.random.normal(k1, (Cr, in_channels), jnp.float32) * 0.05
    b1 = jax.random.normal(k2, (Cr,), jnp.float32) * 0.01
    w2 = jax.random.normal(k3, (in_channels, Cr), jnp.float32) * 0.05
    b2 = jax.random.normal(k4, (in_channels,), jnp.float32) * 0.01

    # DCT filter buffer (same construction as MultiSpectralDCTLayer, 'top16').
    mapper_x, mapper_y = get_freq_indices('top16')
    mapper_x = [m * (dct_hw // 7) for m in mapper_x]
    mapper_y = [m * (dct_hw // 7) for m in mapper_y]
    wdct = jnp.asarray(get_dct_filter(dct_hw, dct_hw, mapper_x, mapper_y, in_channels))

    # --- 1) no-pool path (H = W = dct), f32, N=8 -> nb=2, grid=(4,) ---
    H = W = dct_hw
    N = 8
    params = make_fca_params(wdct, w1, b1, w2, b2, dct_hw, dct_hw, H, W)
    x = jax.random.normal(kx, (N, in_channels, H, W), jnp.float32)
    out = jax.block_until_ready(fca_forward(x, params))
    ref = ref_forward(x, wdct, w1, b1, w2, b2, dct_hw, dct_hw)
    np.testing.assert_allclose(np.asarray(out), np.asarray(ref), rtol=5e-3, atol=5e-3)

    # --- 2) pooled path (H = W = 2*dct), non-divisible batch tail (N=9, nb=2) ---
    H2 = W2 = 2 * dct_hw
    N2 = 9
    params2 = make_fca_params(wdct, w1, b1, w2, b2, dct_hw, dct_hw, H2, W2)
    x2 = jax.random.normal(kx2, (N2, in_channels, H2, W2), jnp.float32)
    out2 = jax.block_until_ready(fca_forward(x2, params2))
    ref2 = ref_forward(x2, wdct, w1, b1, w2, b2, dct_hw, dct_hw)
    np.testing.assert_allclose(np.asarray(out2), np.asarray(ref2), rtol=5e-3, atol=5e-3)

    # --- 3) bf16 activations (halves HBM bytes; f32 accumulate inside) ---
    x3 = jax.random.normal(kx3, (N, in_channels, H, W), jnp.float32).astype(jnp.bfloat16)
    out3 = jax.block_until_ready(fca_forward(x3, params))
    ref3 = ref_forward(x3.astype(jnp.float32), wdct, w1, b1, w2, b2, dct_hw, dct_hw)
    np.testing.assert_allclose(np.asarray(out3.astype(jnp.float32)), np.asarray(ref3),
                               rtol=2e-2, atol=2e-2)

    # --- 4) donated x: in-place rescale via input/output aliasing under jit ---
    xd = jax.random.normal(kx4, (N, in_channels, H, W), jnp.float32)
    refd = np.asarray(ref_forward(xd, wdct, w1, b1, w2, b2, dct_hw, dct_hw))
    donated_fn = jax.jit(lambda xx, pp: fca_forward(xx, pp, donate_x=True),
                         donate_argnums=0)
    outd = jax.block_until_ready(donated_fn(xd, params))
    np.testing.assert_allclose(np.asarray(outd), refd, rtol=5e-3, atol=5e-3)

    print("KERNEL_OK")
</pallas_src>

<mosaic_0001>
module attributes {stable_mosaic.version = 11 : i64} {
  func.func @fca_kernel(%arg0: i32, %arg1: memref<2x512x49xf32, #tpu.memory_space<vmem>>, %arg2: memref<512x49xf32, #tpu.memory_space<vmem>>, %arg3: memref<512x128xf32, #tpu.memory_space<vmem>>, %arg4: memref<1x128xf32, #tpu.memory_space<vmem>>, %arg5: memref<128x512xf32, #tpu.memory_space<vmem>>, %arg6: memref<1x512xf32, #tpu.memory_space<vmem>>, %arg7: memref<2x512x49xf32, #tpu.memory_space<vmem>>) attributes {dimension_semantics = [#tpu.dimension_semantics<parallel>], iteration_bounds = array<i64: 4>, scalar_prefetch = 0 : i64, scratch_operands = 0 : i64, tpu.core_type = #tpu.core_type<tc>, window_params = [{transform_indices = @transform_0, window_bounds = array<i64: 2, 512, 49>}, {pipeline_mode = #tpu.pipeline_mode<synchronous>, transform_indices = @transform_1, window_bounds = array<i64: 512, 49>}, {pipeline_mode = #tpu.pipeline_mode<synchronous>, transform_indices = @transform_2, window_bounds = array<i64: 512, 128>}, {pipeline_mode = #tpu.pipeline_mode<synchronous>, transform_indices = @transform_3, window_bounds = array<i64: 1, 128>}, {pipeline_mode = #tpu.pipeline_mode<synchronous>, transform_indices = @transform_4, window_bounds = array<i64: 128, 512>}, {pipeline_mode = #tpu.pipeline_mode<synchronous>, transform_indices = @transform_5, window_bounds = array<i64: 1, 512>}, {transform_indices = @transform_6, window_bounds = array<i64: 2, 512, 49>}]} {
    %c0 = arith.constant 0 : index
    %c0_0 = arith.constant 0 : index
    %c0_1 = arith.constant 0 : index
    %0 = vector.load %arg1[%c0, %c0_0, %c0_1] : memref<2x512x49xf32, #tpu.memory_space<vmem>>, vector<2x512x49xf32>
    %c0_2 = arith.constant 0 : index
    %c0_3 = arith.constant 0 : index
    %1 = vector.load %arg2[%c0_2, %c0_3] : memref<512x49xf32, #tpu.memory_space<vmem>>, vector<512x49xf32>
    %2 = vector.shape_cast %1 : vector<512x49xf32> to vector<1x512x49xf32>
    %3 = vector.broadcast %2 : vector<1x512x49xf32> to vector<2x512x49xf32>
    %4 = arith.mulf %0, %3 : vector<2x512x49xf32>
    %cst = arith.constant dense<0.000000e+00> : vector<2x512xf32>
    %5 = vector.multi_reduction <add>, %4, %cst [2] : vector<2x512x49xf32> to vector<2x512xf32>
    %c0_4 = arith.constant 0 : index
    %c0_5 = arith.constant 0 : index
    %6 = vector.load %arg3[%c0_4, %c0_5] : memref<512x128xf32, #tpu.memory_space<vmem>>, vector<512x128xf32>
    %cst_6 = arith.constant dense<0.000000e+00> : vector<2x128xf32>
    %7 = tpu.matmul %5, %6, %cst_6 {dimension_numbers = #tpu.dot_dimension_numbers<[1], [0], [0], [1], [0, 0, 1, 1], [], []>} : vector<2x512xf32>, vector<512x128xf32>, vector<2x128xf32> -> vector<2x128xf32>
    %c0_7 = arith.constant 0 : index
    %c0_8 = arith.constant 0 : index
    %8 = vector.load %arg4[%c0_7, %c0_8] : memref<1x128xf32, #tpu.memory_space<vmem>>, vector<1x128xf32>
    %9 = vector.broadcast %8 : vector<1x128xf32> to vector<2x128xf32>
    %10 = arith.addf %7, %9 : vector<2x128xf32>
    %cst_9 = arith.constant 0.000000e+00 : f32
    %11 = vector.broadcast %cst_9 : f32 to vector<2x128xf32>
    %12 = arith.maximumf %10, %11 : vector<2x128xf32>
    %c0_10 = arith.constant 0 : index
    %c0_11 = arith.constant 0 : index
    %13 = vector.load %arg5[%c0_10, %c0_11] : memref<128x512xf32, #tpu.memory_space<vmem>>, vector<128x512xf32>
    %cst_12 = arith.constant dense<0.000000e+00> : vector<2x512xf32>
    %14 = tpu.matmul %12, %13, %cst_12 {dimension_numbers = #tpu.dot_dimension_numbers<[1], [0], [0], [1], [0, 0, 1, 1], [], []>} : vector<2x128xf32>, vector<128x512xf32>, vector<2x512xf32> -> vector<2x512xf32>
    %c0_13 = arith.constant 0 : index
    %c0_14 = arith.constant 0 : index
    %15 = vector.load %arg6[%c0_13, %c0_14] : memref<1x512xf32, #tpu.memory_space<vmem>>, vector<1x512xf32>
    %16 = vector.broadcast %15 : vector<1x512xf32> to vector<2x512xf32>
    %17 = arith.addf %14, %16 : vector<2x512xf32>
    %cst_15 = arith.constant 0.000000e+00 : f32
    %18 = vector.broadcast %cst_15 : f32 to vector<2x512xf32>
    %19 = arith.subf %18, %17 : vector<2x512xf32>
    %20 = math.exp %19 : vector<2x512xf32>
    %cst_16 = arith.constant 1.000000e+00 : f32
    %21 = vector.broadcast %cst_16 : f32 to vector<2x512xf32>
    %22 = arith.addf %21, %20 : vector<2x512xf32>
    %23 = tpu.reciprocal %22 {approx = true} : vector<2x512xf32> -> vector<2x512xf32>
    %c0_17 = arith.constant 0 : index
    %c0_18 = arith.constant 0 : index
    %c0_19 = arith.constant 0 : index
    %24 = vector.load %arg1[%c0_17, %c0_18, %c0_19] : memref<2x512x49xf32, #tpu.memory_space<vmem>>, vector<2x512x49xf32>
    %25 = vector.shape_cast %23 : vector<2x512xf32> to vector<2x512x1xf32>
    %26 = vector.broadcast %25 : vector<2x512x1xf32> to vector<2x512x49xf32>
    %27 = arith.mulf %24, %26 : vector<2x512x49xf32>
    %c0_20 = arith.constant 0 : index
    %c0_21 = arith.constant 0 : index
    %c0_22 = arith.constant 0 : index
    %28 = vector.load %arg7[%c0_20, %c0_21, %c0_22] : memref<2x512x49xf32, #tpu.memory_space<vmem>>, vector<2x512x49xf32>
    tpu.vector_store %arg7[%c0_20, %c0_21, %c0_22], %27 {strides = array<i32>} : memref<2x512x49xf32, #tpu.memory_space<vmem>>, vector<2x512x49xf32>,
    return
  }
  func.func @transform_0(%arg0: i32) -> (i32, i32, i32) {
    %c0_i32 = arith.constant 0 : i32
    %c0_i32_0 = arith.constant 0 : i32
    %c0_i32_1 = arith.constant 0 : i32
    return %arg0, %c0_i32, %c0_i32_0 : i32, i32, i32
  }
  func.func @transform_1(%arg0: i32) -> (i32, i32) {
    %c0_i32 = arith.constant 0 : i32
    %c0_i32_0 = arith.constant 0 : i32
    %c0_i32_1 = arith.constant 0 : i32
    return %c0_i32, %c0_i32_0 : i32, i32
  }
  func.func @transform_2(%arg0: i32) -> (i32, i32) {
    %c0_i32 = arith.constant 0 : i32
    %c0_i32_0 = arith.constant 0 : i32
    %c0_i32_1 = arith.constant 0 : i32
    return %c0_i32, %c0_i32_0 : i32, i32
  }
  func.func @transform_3(%arg0: i32) -> (i32, i32) {
    %c0_i32 = arith.constant 0 : i32
    %c0_i32_0 = arith.constant 0 : i32
    %c0_i32_1 = arith.constant 0 : i32
    return %c0_i32, %c0_i32_0 : i32, i32
  }
  func.func @transform_4(%arg0: i32) -> (i32, i32) {
    %c0_i32 = arith.constant 0 : i32
    %c0_i32_0 = arith.constant 0 : i32
    %c0_i32_1 = arith.constant 0 : i32
    return %c0_i32, %c0_i32_0 : i32, i32
  }
  func.func @transform_5(%arg0: i32) -> (i32, i32) {
    %c0_i32 = arith.constant 0 : i32
    %c0_i32_0 = arith.constant 0 : i32
    %c0_i32_1 = arith.constant 0 : i32
    return %c0_i32, %c0_i32_0 : i32, i32
  }
  func.func @transform_6(%arg0: i32) -> (i32, i32, i32) {
    %c0_i32 = arith.constant 0 : i32
    %c0_i32_0 = arith.constant 0 : i32
    %c0_i32_1 = arith.constant 0 : i32
    return %arg0, %c0_i32, %c0_i32_0 : i32, i32, i32
  }
}

</mosaic_0001>

<llo_original>
// kernel: tpu_custom_call.1
$region0: #{tpu_custom_call.1}
  #allocation0 [shape = 'u32[]', space=smem, size = 0x4, offset = 0x4, fixed_abs, tag = 'smem constant byte address 0x4 - core index']
  #allocation1 [shape = 'u32[144,128]{1,0:T(1,128)}', space=vmem, size = 0x12000, scoped, tag = 'internal scratch']
  %s0 = inlined_call_operand.vmem [shape: f32[8,512,49], index: 0, kind: input, shape index: {}]
  %s1 = inlined_call_operand.vmem [shape: f32[512,49], index: 1, kind: input, shape index: {}]
  %s2 = inlined_call_operand.vmem [shape: f32[512,128], index: 2, kind: input, shape index: {}]
  %s3 = inlined_call_operand.vmem [shape: f32[1,128], index: 3, kind: input, shape index: {}]
  %s4 = inlined_call_operand.vmem [shape: f32[128,512], index: 4, kind: input, shape index: {}]
  %s5 = inlined_call_operand.vmem [shape: f32[1,512], index: 5, kind: input, shape index: {}]
  %s6 = inlined_call_operand.vmem [shape: f32[8,512,49], index: 6, kind: output, shape index: {}]
  %s7 = sld [smem:[#allocation0]]
  $region57: #{tpu_custom_call.1} parent=0
    _
  %s9 = ssub.s32 1, %s7
  %s10 = scalar_select 0, %s9, %s7
  loop: start=0, step=1, limit=6
  $region2: #{tpu_custom_call.1} parent=0 // loop_pre_header
    _
  $region3: #{tpu_custom_call.1} parent=0 // loop_header
    %s12 = sphi 0, %s16
    %p13 = scmp.ge.s32.totalorder %s12, 6
    %s22 = sphi 0, %s24
    %s25 = sphi 0, %s22
    %s26 = sphi 0, %s25
    %s42 = sphi 0, %s26
    %s46 = sphi 0, %s46
    %s48 = sphi 0, %s46
    %s49 = sphi 0, %s48
    %s63 = sphi 0, %s49
    %s67 = sphi 0, %s67
    %s69 = sphi 0, %s67
    %s70 = sphi 0, %s69
    %s84 = sphi 0, %s70
    %s88 = sphi 0, %s88
    %s90 = sphi 0, %s88
    %s91 = sphi 0, %s90
    %s105 = sphi 0, %s91
    %s109 = sphi 0, %s109
    %s111 = sphi 0, %s109
    %s112 = sphi 0, %s111
    %s126 = sphi 0, %s112
    %s130 = sphi 0, %s130
    %s132 = sphi 0, %s130
    %s133 = sphi 0, %s132
    %s147 = sphi 0, %s133
    %s153 = sphi 0, %s155
    %s156 = sphi 0, %s153
    %s157 = sphi 0, %s156
    %s173 = sphi 0, %s157
  $region4: #{tpu_custom_call.1} parent=0 // loop_header_branch
    %15 = sbr.rel (%p13) target = $region8
  $region5: #{tpu_custom_call.1} parent=0 // loop_body
    %s17 = ssub.s32 %s12, 1
    %s18 = ssub.s32 %s12, 2
    %s19 = sadd.s32 %s12, 1
    %s20 = ssub.s32 %s12, %s19
    %p21 = scmp.eq.s32.totalorder %s20, 0
    %s23 = sadd.s32 %s22, 1
    %s24 = scalar_select %p21, %s22, %s23
    %p27 = pneg %p21
    %p28 = scmp.eq.s32.totalorder %s12, 3
    %p29 = por %p27, %p28
    %p30 = scmp.ne.s32.totalorder %s22, %s25
    %p31 = scmp.eq.s32.totalorder %s12, 0
    %p32 = por %p30, %p31
    %p33 = scmp.ne.s32.totalorder %s22, %s25
    %p34 = scmp.eq.s32.totalorder %s17, 3
    %p35 = por %p33, %p34
    %p36 = scmp.ne.s32.totalorder %s25, %s26
    %p37 = scmp.eq.s32.totalorder %s17, 0
    %p38 = por %p36, %p37
    %p39 = scmp.ne.s32.totalorder %s25, %s26
    %p40 = scmp.eq.s32.totalorder %s18, 3
    %p41 = por %p39, %p40
    %p43 = scmp.ne.s32.totalorder %s26, %s42
    %p44 = scmp.eq.s32.totalorder %s18, 0
    %p45 = por %p43, %p44
    %s47 = sadd.s32 %s46, 1
    %p50 = scmp.eq.s32.totalorder %s12, 3
    %p51 = scmp.ne.s32.totalorder %s46, %s48
    %p52 = scmp.eq.s32.totalorder %s12, 0
    %p53 = por %p51, %p52
    %p54 = scmp.ne.s32.totalorder %s46, %s48
    %p55 = scmp.eq.s32.totalorder %s17, 3
    %p56 = por %p54, %p55
    %p57 = scmp.ne.s32.totalorder %s48, %s49
    %p58 = scmp.eq.s32.totalorder %s17, 0
    %p59 = por %p57, %p58
    %p60 = scmp.ne.s32.totalorder %s48, %s49
    %p61 = scmp.eq.s32.totalorder %s18, 3
    %p62 = por %p60, %p61
    %p64 = scmp.ne.s32.totalorder %s49, %s63
    %p65 = scmp.eq.s32.totalorder %s18, 0
    %p66 = por %p64, %p65
    %s68 = sadd.s32 %s67, 1
    %p71 = scmp.eq.s32.totalorder %s12, 3
    %p72 = scmp.ne.s32.totalorder %s67, %s69
    %p73 = scmp.eq.s32.totalorder %s12, 0
    %p74 = por %p72, %p73
    %p75 = scmp.ne.s32.totalorder %s67, %s69
    %p76 = scmp.eq.s32.totalorder %s17, 3
    %p77 = por %p75, %p76
    %p78 = scmp.ne.s32.totalorder %s69, %s70
    %p79 = scmp.eq.s32.totalorder %s17, 0
    %p80 = por %p78, %p79
    %p81 = scmp.ne.s32.totalorder %s69, %s70
    %p82 = scmp.eq.s32.totalorder %s18, 3
    %p83 = por %p81, %p82
    %p85 = scmp.ne.s32.totalorder %s70, %s84
    %p86 = scmp.eq.s32.totalorder %s18, 0
    %p87 = por %p85, %p86
    %s89 = sadd.s32 %s88, 1
    %p92 = scmp.eq.s32.totalorder %s12, 3
    %p93 = scmp.ne.s32.totalorder %s88, %s90
    %p94 = scmp.eq.s32.totalorder %s12, 0
    %p95 = por %p93, %p94
    %p96 = scmp.ne.s32.totalorder %s88, %s90
    %p97 = scmp.eq.s32.totalorder %s17, 3
    %p98 = por %p96, %p97
    %p99 = scmp.ne.s32.totalorder %s90, %s91
    %p100 = scmp.eq.s32.totalorder %s17, 0
    %p101 = por %p99, %p100
    %p102 = scmp.ne.s32.totalorder %s90, %s91
    %p103 = scmp.eq.s32.totalorder %s18, 3
    %p104 = por %p102, %p103
    %p106 = scmp.ne.s32.totalorder %s91, %s105
    %p107 = scmp.eq.s32.totalorder %s18, 0
    %p108 = por %p106, %p107
    %s110 = sadd.s32 %s109, 1
    %p113 = scmp.eq.s32.totalorder %s12, 3
    %p114 = scmp.ne.s32.totalorder %s109, %s111
    %p115 = scmp.eq.s32.totalorder %s12, 0
    %p116 = por %p114, %p115
    %p117 = scmp.ne.s32.totalorder %s109, %s111
    %p118 = scmp.eq.s32.totalorder %s17, 3
    %p119 = por %p117, %p118
    %p120 = scmp.ne.s32.totalorder %s111, %s112
    %p121 = scmp.eq.s32.totalorder %s17, 0
    %p122 = por %p120, %p121
    %p123 = scmp.ne.s32.totalorder %s111, %s112
    %p124 = scmp.eq.s32.totalorder %s18, 3
    %p125 = por %p123, %p124
    %p127 = scmp.ne.s32.totalorder %s112, %s126
    %p128 = scmp.eq.s32.totalorder %s18, 0
    %p129 = por %p127, %p128
    %s131 = sadd.s32 %s130, 1
    %p134 = scmp.eq.s32.totalorder %s12, 3
    %p135 = scmp.ne.s32.totalorder %s130, %s132
    %p136 = scmp.eq.s32.totalorder %s12, 0
    %p137 = por %p135, %p136
    %p138 = scmp.ne.s32.totalorder %s130, %s132
    %p139 = scmp.eq.s32.totalorder %s17, 3
    %p140 = por %p138, %p139
    %p141 = scmp.ne.s32.totalorder %s132, %s133
    %p142 = scmp.eq.s32.totalorder %s17, 0
    %p143 = por %p141, %p142
    %p144 = scmp.ne.s32.totalorder %s132, %s133
    %p145 = scmp.eq.s32.totalorder %s18, 3
    %p146 = por %p144, %p145
    %p148 = scmp.ne.s32.totalorder %s133, %s147
    %p149 = scmp.eq.s32.totalorder %s18, 0
    %p150 = por %p148, %p149
    %s151 = ssub.s32 %s12, %s19
    %p152 = scmp.eq.s32.totalorder %s151, 0
    %s154 = sadd.s32 %s153, 1
    %s155 = scalar_select %p152, %s153, %s154
    %p158 = pneg %p152
    %p159 = scmp.eq.s32.totalorder %s12, 3
    %p160 = por %p158, %p159
    %p161 = scmp.ne.s32.totalorder %s153, %s156
    %p162 = scmp.eq.s32.totalorder %s12, 0
    %p163 = por %p161, %p162
    %p164 = scmp.ne.s32.totalorder %s153, %s156
    %p165 = scmp.eq.s32.totalorder %s17, 3
    %p166 = por %p164, %p165
    %p167 = scmp.ne.s32.totalorder %s156, %s157
    %p168 = scmp.eq.s32.totalorder %s17, 0
    %p169 = por %p167, %p168
    %p170 = scmp.ne.s32.totalorder %s156, %s157
    %p171 = scmp.eq.s32.totalorder %s18, 3
    %p172 = por %p170, %p171
    %p174 = scmp.ne.s32.totalorder %s157, %s173
    %p175 = scmp.eq.s32.totalorder %s18, 0
    %p176 = por %p174, %p175
    %p177 = scmp.le.s32.totalorder 1, %s12
    %p178 = scmp.lt.s32.totalorder %s12, 5
    %p179 = pnand %p177, %p178
    %p180 = pneg %p179
    // Predicated region
    $region9: #{tpu_custom_call.1} parent=5 // pred_check
      _
    $region10: #{tpu_custom_call.1} parent=5 // pred_check_branch
      %182 = sbr.rel (%p179) target = $region12
    $region11: #{tpu_custom_call.1} parent=5 // pred_region
      %s183 = ssub.s32 %s12, 1
      // Predicated region
      $region13: #{tpu_custom_call.1} parent=11 // pred_check
        %p184 = pneg %p59
      $region14: #{tpu_custom_call.1} parent=11 // pred_check_branch
        %186 = sbr.rel (%p184) target = $region16
      $region15: #{tpu_custom_call.1} parent=11 // pred_region
        _
      $region16: #{tpu_custom_call.1} parent=11 // pred_fallthru
        _
      // Predicated region
      $region17: #{tpu_custom_call.1} parent=11 // pred_check
        %p187 = pneg %p80
      $region18: #{tpu_custom_call.1} parent=11 // pred_check_branch
        %189 = sbr.rel (%p187) target = $region20
      $region19: #{tpu_custom_call.1} parent=11 // pred_region
        _
      $region20: #{tpu_custom_call.1} parent=11 // pred_fallthru
        _
      // Predicated region
      $region21: #{tpu_custom_call.1} parent=11 // pred_check
        %p190 = pneg %p101
      $region22: #{tpu_custom_call.1} parent=11 // pred_check_branch
        %192 = sbr.rel (%p190) target = $region24
      $region23: #{tpu_custom_call.1} parent=11 // pred_region
        _
      $region24: #{tpu_custom_call.1} parent=11 // pred_fallthru
        _
      // Predicated region
      $region25: #{tpu_custom_call.1} parent=11 // pred_check
        %p193 = pneg %p122
      $region26: #{tpu_custom_call.1} parent=11 // pred_check_branch
        %195 = sbr.rel (%p193) target = $region28
      $region27: #{tpu_custom_call.1} parent=11 // pred_region
        _
      $region28: #{tpu_custom_call.1} parent=11 // pred_fallthru
        _
      // Predicated region
      $region29: #{tpu_custom_call.1} parent=11 // pred_check
        %p196 = pneg %p143
      $region30: #{tpu_custom_call.1} parent=11 // pred_check_branch
        %198 = sbr.rel (%p196) target = $region32
      $region31: #{tpu_custom_call.1} parent=11 // pred_region
        _
      $region32: #{tpu_custom_call.1} parent=11 // pred_fallthru
        _
    $region12: #{tpu_custom_call.1} parent=5 // pred_fallthru
      _
    %p199 = scmp.lt.s32.totalorder %s12, 4
    // Predicated region
    $region33: #{tpu_custom_call.1} parent=5 // pred_check
      %p200 = pneg %p199
    $region34: #{tpu_custom_call.1} parent=5 // pred_check_branch
      %202 = sbr.rel (%p200) target = $region36
    $region35: #{tpu_custom_call.1} parent=5 // pred_region
      // Predicated region
      $region37: #{tpu_custom_call.1} parent=35 // pred_check
        %p203 = pneg %p32
      $region38: #{tpu_custom_call.1} parent=35 // pred_check_branch
        %205 = sbr.rel (%p203) target = $region40
      $region39: #{tpu_custom_call.1} parent=35 // pred_region
        %s206 = smul.u32 2, %s12
        %p207 = scmp.lt.s32.totalorder %s206, 7
        %s208 = scalar_select %p207, %s206, 7
        %s209 = smul.addr %s208, 64
        %s210 = smul.addr %s209, 8
        %s211 = scalar_lea.vmem %s0, %s210
        %s212 = smul.u32 2, %s12
      $region40: #{tpu_custom_call.1} parent=35 // pred_fallthru
        _
    $region36: #{tpu_custom_call.1} parent=5 // pred_fallthru
      _
    %p213 = scmp.le.s32.totalorder 1, %s12
    %p214 = scmp.lt.s32.totalorder %s12, 5
    %p215 = pnand %p213, %p214
    %p216 = pneg %p215
    // Predicated region
    $region41: #{tpu_custom_call.1} parent=5 // pred_check
      _
    $region42: #{tpu_custom_call.1} parent=5 // pred_check_branch
      %218 = sbr.rel (%p215) target = $region44
    $region43: #{tpu_custom_call.1} parent=5 // pred_region
      %s219 = ssub.s32 %s12, 1
      %s220 = smul.u32 2, %s17
      %p221 = scmp.lt.s32.totalorder %s220, 7
      %s222 = scalar_select %p221, %s220, 7
      %s223 = smul.addr %s222, 64
      %s224 = smul.addr %s223, 8
      %s225 = scalar_lea.vmem %s0, %s224
      %p226 = pneg %p38
      %p227 = pneg %p35
      %p228 = pneg %p59
      %p229 = pneg %p56
      %p230 = pneg %p80
      %p231 = pneg %p77
      %p232 = pneg %p101
      %p233 = pneg %p98
      %p234 = pneg %p122
      %p235 = pneg %p119
      %p236 = pneg %p143
      %p237 = pneg %p140
      %p238 = pneg %p169
      %p239 = pneg %p166
      %s240 = smul.u32 2, %s17
      %p241 = scmp.lt.s32.totalorder %s240, 7
      %s242 = scalar_select %p241, %s240, 7
      %s243 = smul.addr %s242, 64
      %s244 = smul.addr %s243, 8
      %s245 = scalar_lea.vmem %s6, %s244
      %s246 = smul.u32 2, %s17
      %p247 = scmp.lt.s32.totalorder %s246, 7
      %s248 = scalar_select %p247, %s246, 7
      %s249 = smul.addr %s248, 64
      %s250 = smul.addr %s249, 8
      %s251 = scalar_lea.vmem %s0, %s250
      %s252 = smul.u32 2, %s17
      %s253 = smul.u32 2, %s17
      %p254 = scmp.lt.s32.totalorder %s253, 7
      %s255 = scalar_select %p254, %s253, 7
      %s256 = smul.addr %s255, 64
      %s257 = smul.addr %s256, 8
      %s258 = scalar_lea.vmem %s6, %s257
      %s259 = smul.u32 2, %s17
      %v260 = vld [vmem:[%s251] sm:$0xff]
      %v261 = vld [vmem:[%s251 + $0x8] sm:$0xff]
      %v262 = vld [vmem:[%s251 + $0x10] sm:$0xff]
      %v263 = vld [vmem:[%s251 + $0x18] sm:$0xff]
      %v264 = vld [vmem:[%s251 + $0x20] sm:$0xff]
      %v265 = vld [vmem:[%s251 + $0x28] sm:$0xff]
      %v266 = vld [vmem:[%s251 + $0x30] sm:$0xff]
      %v267 = vld [vmem:[%s251 + $0x38] sm:$0xff]
      %v268 = vld [vmem:[%s251 + $0x40] sm:$0xff]
      %v269 = vld [vmem:[%s251 + $0x48] sm:$0xff]
      %v270 = vld [vmem:[%s251 + $0x50] sm:$0xff]
      %v271 = vld [vmem:[%s251 + $0x58] sm:$0xff]
      %v272 = vld [vmem:[%s251 + $0x60] sm:$0xff]
      %v273 = vld [vmem:[%s251 + $0x68] sm:$0xff]
      %v274 = vld [vmem:[%s251 + $0x70] sm:$0xff]
      %v275 = vld [vmem:[%s251 + $0x78] sm:$0xff]
      %v276 = vld [vmem:[%s251 + $0x80] sm:$0xff]
      %v277 = vld [vmem:[%s251 + $0x88] sm:$0xff]
      %v278 = vld [vmem:[%s251 + $0x90] sm:$0xff]
      %v279 = vld [vmem:[%s251 + $0x98] sm:$0xff]
      %v280 = vld [vmem:[%s251 + $0xa0] sm:$0xff]
      %v281 = vld [vmem:[%s251 + $0xa8] sm:$0xff]
      %v282 = vld [vmem:[%s251 + $0xb0] sm:$0xff]
      %v283 = vld [vmem:[%s251 + $0xb8] sm:$0xff]
      %v284 = vld [vmem:[%s251 + $0xc0] sm:$0xff]
      %v285 = vld [vmem:[%s251 + $0xc8] sm:$0xff]
      %v286 = vld [vmem:[%s251 + $0xd0] sm:$0xff]
      %v287 = vld [vmem:[%s251 + $0xd8] sm:$0xff]
      %v288 = vld [vmem:[%s251 + $0xe0] sm:$0xff]
      %v289 = vld [vmem:[%s251 + $0xe8] sm:$0xff]
      %v290 = vld [vmem:[%s251 + $0xf0] sm:$0xff]
      %v291 = vld [vmem:[%s251 + $0xf8] sm:$0xff]
      %v292 = vld [vmem:[%s251 + $0x100] sm:$0xff]
      %v293 = vld [vmem:[%s251 + $0x108] sm:$0xff]
      %v294 = vld [vmem:[%s251 + $0x110] sm:$0xff]
      %v295 = vld [vmem:[%s251 + $0x118] sm:$0xff]
      %v296 = vld [vmem:[%s251 + $0x120] sm:$0xff]
      %v297 = vld [vmem:[%s251 + $0x128] sm:$0xff]
      %v298 = vld [vmem:[%s251 + $0x130] sm:$0xff]
      %v299 = vld [vmem:[%s251 + $0x138] sm:$0xff]
      %v300 = vld [vmem:[%s251 + $0x140] sm:$0xff]
      %v301 = vld [vmem:[%s251 + $0x148] sm:$0xff]
      %v302 = vld [vmem:[%s251 + $0x150] sm:$0xff]
      %v303 = vld [vmem:[%s251 + $0x158] sm:$0xff]
      %v304 = vld [vmem:[%s251 + $0x160] sm:$0xff]
      %v305 = vld [vmem:[%s251 + $0x168] sm:$0xff]
      %v306 = vld [vmem:[%s251 + $0x170] sm:$0xff]
      %v307 = vld [vmem:[%s251 + $0x178] sm:$0xff]
      %v308 = vld [vmem:[%s251 + $0x180] sm:$0xff]
      %v309 = vld [vmem:[%s251 + $0x188] sm:$0xff]
      %v310 = vld [vmem:[%s251 + $0x190] sm:$0xff]
      %v311 = vld [vmem:[%s251 + $0x198] sm:$0xff]
      %v312 = vld [vmem:[%s251 + $0x1a0] sm:$0xff]
      %v313 = vld [vmem:[%s251 + $0x1a8] sm:$0xff]
      %v314 = vld [vmem:[%s251 + $0x1b0] sm:$0xff]
      %v315 = vld [vmem:[%s251 + $0x1b8] sm:$0xff]
      %v316 = vld [vmem:[%s251 + $0x1c0] sm:$0xff]
      %v317 = vld [vmem:[%s251 + $0x1c8] sm:$0xff]
      %v318 = vld [vmem:[%s251 + $0x1d0] sm:$0xff]
      %v319 = vld [vmem:[%s251 + $0x1d8] sm:$0xff]
      %v320 = vld [vmem:[%s251 + $0x1e0] sm:$0xff]
      %v321 = vld [vmem:[%s251 + $0x1e8] sm:$0xff]
      %v322 = vld [vmem:[%s251 + $0x1f0] sm:$0xff]
      %v323 = vld [vmem:[%s251 + $0x1f8] sm:$0xff]
      %v324 = vld [vmem:[%s251 + $0x200] sm:$0xff]
      %v325 = vld [vmem:[%s251 + $0x208] sm:$0xff]
      %v326 = vld [vmem:[%s251 + $0x210] sm:$0xff]
      %v327 = vld [vmem:[%s251 + $0x218] sm:$0xff]
      %v328 = vld [vmem:[%s251 + $0x220] sm:$0xff]
      %v329 = vld [vmem:[%s251 + $0x228] sm:$0xff]
      %v330 = vld [vmem:[%s251 + $0x230] sm:$0xff]
      %v331 = vld [vmem:[%s251 + $0x238] sm:$0xff]
      %v332 = vld [vmem:[%s251 + $0x240] sm:$0xff]
      %v333 = vld [vmem:[%s251 + $0x248] sm:$0xff]
      %v334 = vld [vmem:[%s251 + $0x250] sm:$0xff]
      %v335 = vld [vmem:[%s251 + $0x258] sm:$0xff]
      %v336 = vld [vmem:[%s251 + $0x260] sm:$0xff]
      %v337 = vld [vmem:[%s251 + $0x268] sm:$0xff]
      %v338 = vld [vmem:[%s251 + $0x270] sm:$0xff]
      %v339 = vld [vmem:[%s251 + $0x278] sm:$0xff]
      %v340 = vld [vmem:[%s251 + $0x280] sm:$0xff]
      %v341 = vld [vmem:[%s251 + $0x288] sm:$0xff]
      %v342 = vld [vmem:[%s251 + $0x290] sm:$0xff]
      %v343 = vld [vmem:[%s251 + $0x298] sm:$0xff]
      %v344 = vld [vmem:[%s251 + $0x2a0] sm:$0xff]
      %v345 = vld [vmem:[%s251 + $0x2a8] sm:$0xff]
      %v346 = vld [vmem:[%s251 + $0x2b0] sm:$0xff]
      %v347 = vld [vmem:[%s251 + $0x2b8] sm:$0xff]
      %v348 = vld [vmem:[%s251 + $0x2c0] sm:$0xff]
      %v349 = vld [vmem:[%s251 + $0x2c8] sm:$0xff]
      %v350 = vld [vmem:[%s251 + $0x2d0] sm:$0xff]
      %v351 = vld [vmem:[%s251 + $0x2d8] sm:$0xff]
      %v352 = vld [vmem:[%s251 + $0x2e0] sm:$0xff]
      %v353 = vld [vmem:[%s251 + $0x2e8] sm:$0xff]
      %v354 = vld [vmem:[%s251 + $0x2f0] sm:$0xff]
      %v355 = vld [vmem:[%s251 + $0x2f8] sm:$0xff]
      %v356 = vld [vmem:[%s251 + $0x300] sm:$0xff]
      %v357 = vld [vmem:[%s251 + $0x308] sm:$0xff]
      %v358 = vld [vmem:[%s251 + $0x310] sm:$0xff]
      %v359 = vld [vmem:[%s251 + $0x318] sm:$0xff]
      %v360 = vld [vmem:[%s251 + $0x320] sm:$0xff]
      %v361 = vld [vmem:[%s251 + $0x328] sm:$0xff]
      %v362 = vld [vmem:[%s251 + $0x330] sm:$0xff]
      %v363 = vld [vmem:[%s251 + $0x338] sm:$0xff]
      %v364 = vld [vmem:[%s251 + $0x340] sm:$0xff]
      %v365 = vld [vmem:[%s251 + $0x348] sm:$0xff]
      %v366 = vld [vmem:[%s251 + $0x350] sm:$0xff]
      %v367 = vld [vmem:[%s251 + $0x358] sm:$0xff]
      %v368 = vld [vmem:[%s251 + $0x360] sm:$0xff]
      %v369 = vld [vmem:[%s251 + $0x368] sm:$0xff]
      %v370 = vld [vmem:[%s251 + $0x370] sm:$0xff]
      %v371 = vld [vmem:[%s251 + $0x378] sm:$0xff]
      %v372 = vld [vmem:[%s251 + $0x380] sm:$0xff]
      %v373 = vld [vmem:[%s251 + $0x388] sm:$0xff]
      %v374 = vld [vmem:[%s251 + $0x390] sm:$0xff]
      %v375 = vld [vmem:[%s251 + $0x398] sm:$0xff]
      %v376 = vld [vmem:[%s251 + $0x3a0] sm:$0xff]
      %v377 = vld [vmem:[%s251 + $0x3a8] sm:$0xff]
      %v378 = vld [vmem:[%s251 + $0x3b0] sm:$0xff]
      %v379 = vld [vmem:[%s251 + $0x3b8] sm:$0xff]
      %v380 = vld [vmem:[%s251 + $0x3c0] sm:$0xff]
      %v381 = vld [vmem:[%s251 + $0x3c8] sm:$0xff]
      %v382 = vld [vmem:[%s251 + $0x3d0] sm:$0xff]
      %v383 = vld [vmem:[%s251 + $0x3d8] sm:$0xff]
      %v384 = vld [vmem:[%s251 + $0x3e0] sm:$0xff]
      %v385 = vld [vmem:[%s251 + $0x3e8] sm:$0xff]
      %v386 = vld [vmem:[%s251 + $0x3f0] sm:$0xff]
      %v387 = vld [vmem:[%s251 + $0x3f8] sm:$0xff]
      %v388 = vld [vmem:[%s1] sm:$0xff]
      %v389 = vld [vmem:[%s1 + $0x8] sm:$0xff]
      %v390 = vld [vmem:[%s1 + $0x10] sm:$0xff]
      %v391 = vld [vmem:[%s1 + $0x18] sm:$0xff]
      %v392 = vld [vmem:[%s1 + $0x20] sm:$0xff]
      %v393 = vld [vmem:[%s1 + $0x28] sm:$0xff]
      %v394 = vld [vmem:[%s1 + $0x30] sm:$0xff]
      %v395 = vld [vmem:[%s1 + $0x38] sm:$0xff]
      %v396 = vld [vmem:[%s1 + $0x40] sm:$0xff]
      %v397 = vld [vmem:[%s1 + $0x48] sm:$0xff]
      %v398 = vld [vmem:[%s1 + $0x50] sm:$0xff]
      %v399 = vld [vmem:[%s1 + $0x58] sm:$0xff]
      %v400 = vld [vmem:[%s1 + $0x60] sm:$0xff]
      %v401 = vld [vmem:[%s1 + $0x68] sm:$0xff]
      %v402 = vld [vmem:[%s1 + $0x70] sm:$0xff]
      %v403 = vld [vmem:[%s1 + $0x78] sm:$0xff]
      %v404 = vld [vmem:[%s1 + $0x80] sm:$0xff]
      %v405 = vld [vmem:[%s1 + $0x88] sm:$0xff]
      %v406 = vld [vmem:[%s1 + $0x90] sm:$0xff]
      %v407 = vld [vmem:[%s1 + $0x98] sm:$0xff]
      %v408 = vld [vmem:[%s1 + $0xa0] sm:$0xff]
      %v409 = vld [vmem:[%s1 + $0xa8] sm:$0xff]
      %v410 = vld [vmem:[%s1 + $0xb0] sm:$0xff]
      %v411 = vld [vmem:[%s1 + $0xb8] sm:$0xff]
      %v412 = vld [vmem:[%s1 + $0xc0] sm:$0xff]
      %v413 = vld [vmem:[%s1 + $0xc8] sm:$0xff]
      %v414 = vld [vmem:[%s1 + $0xd0] sm:$0xff]
      %v415 = vld [vmem:[%s1 + $0xd8] sm:$0xff]
      %v416 = vld [vmem:[%s1 + $0xe0] sm:$0xff]
      %v417 = vld [vmem:[%s1 + $0xe8] sm:$0xff]
      %v418 = vld [vmem:[%s1 + $0xf0] sm:$0xff]
      %v419 = vld [vmem:[%s1 + $0xf8] sm:$0xff]
      %v420 = vld [vmem:[%s1 + $0x100] sm:$0xff]
      %v421 = vld [vmem:[%s1 + $0x108] sm:$0xff]
      %v422 = vld [vmem:[%s1 + $0x110] sm:$0xff]
      %v423 = vld [vmem:[%s1 + $0x118] sm:$0xff]
      %v424 = vld [vmem:[%s1 + $0x120] sm:$0xff]
      %v425 = vld [vmem:[%s1 + $0x128] sm:$0xff]
      %v426 = vld [vmem:[%s1 + $0x130] sm:$0xff]
      %v427 = vld [vmem:[%s1 + $0x138] sm:$0xff]
      %v428 = vld [vmem:[%s1 + $0x140] sm:$0xff]
      %v429 = vld [vmem:[%s1 + $0x148] sm:$0xff]
      %v430 = vld [vmem:[%s1 + $0x150] sm:$0xff]
      %v431 = vld [vmem:[%s1 + $0x158] sm:$0xff]
      %v432 = vld [vmem:[%s1 + $0x160] sm:$0xff]
      %v433 = vld [vmem:[%s1 + $0x168] sm:$0xff]
      %v434 = vld [vmem:[%s1 + $0x170] sm:$0xff]
      %v435 = vld [vmem:[%s1 + $0x178] sm:$0xff]
      %v436 = vld [vmem:[%s1 + $0x180] sm:$0xff]
      %v437 = vld [vmem:[%s1 + $0x188] sm:$0xff]
      %v438 = vld [vmem:[%s1 + $0x190] sm:$0xff]
      %v439 = vld [vmem:[%s1 + $0x198] sm:$0xff]
      %v440 = vld [vmem:[%s1 + $0x1a0] sm:$0xff]
      %v441 = vld [vmem:[%s1 + $0x1a8] sm:$0xff]
      %v442 = vld [vmem:[%s1 + $0x1b0] sm:$0xff]
      %v443 = vld [vmem:[%s1 + $0x1b8] sm:$0xff]
      %v444 = vld [vmem:[%s1 + $0x1c0] sm:$0xff]
      %v445 = vld [vmem:[%s1 + $0x1c8] sm:$0xff]
      %v446 = vld [vmem:[%s1 + $0x1d0] sm:$0xff]
      %v447 = vld [vmem:[%s1 + $0x1d8] sm:$0xff]
      %v448 = vld [vmem:[%s1 + $0x1e0] sm:$0xff]
      %v449 = vld [vmem:[%s1 + $0x1e8] sm:$0xff]
      %v450 = vld [vmem:[%s1 + $0x1f0] sm:$0xff]
      %v451 = vld [vmem:[%s1 + $0x1f8] sm:$0xff]
      %v452 = vmul.f32 %v260, %v388
      %v453 = vmul.f32 %v261, %v389
      %v454 = vmul.f32 %v262, %v390
      %v455 = vmul.f32 %v263, %v391
      %v456 = vmul.f32 %v264, %v392
      %v457 = vmul.f32 %v265, %v393
      %v458 = vmul.f32 %v266, %v394
      %v459 = vmul.f32 %v267, %v395
      %v460 = vmul.f32 %v268, %v396
      %v461 = vmul.f32 %v269, %v397
      %v462 = vmul.f32 %v270, %v398
      %v463 = vmul.f32 %v271, %v399
      %v464 = vmul.f32 %v272, %v400
      %v465 = vmul.f32 %v273, %v401
      %v466 = vmul.f32 %v274, %v402
      %v467 = vmul.f32 %v275, %v403
      %v468 = vmul.f32 %v276, %v404
      %v469 = vmul.f32 %v277, %v405
      %v470 = vmul.f32 %v278, %v406
      %v471 = vmul.f32 %v279, %v407
      %v472 = vmul.f32 %v280, %v408
      %v473 = vmul.f32 %v281, %v409
      %v474 = vmul.f32 %v282, %v410
      %v475 = vmul.f32 %v283, %v411
      %v476 = vmul.f32 %v284, %v412
      %v477 = vmul.f32 %v285, %v413
      %v478 = vmul.f32 %v286, %v414
      %v479 = vmul.f32 %v287, %v415
      %v480 = vmul.f32 %v288, %v416
      %v481 = vmul.f32 %v289, %v417
      %v482 = vmul.f32 %v290, %v418
      %v483 = vmul.f32 %v291, %v419
      %v484 = vmul.f32 %v292, %v420
      %v485 = vmul.f32 %v293, %v421
      %v486 = vmul.f32 %v294, %v422
      %v487 = vmul.f32 %v295, %v423
      %v488 = vmul.f32 %v296, %v424
      %v489 = vmul.f32 %v297, %v425
      %v490 = vmul.f32 %v298, %v426
      %v491 = vmul.f32 %v299, %v427
      %v492 = vmul.f32 %v300, %v428
      %v493 = vmul.f32 %v301, %v429
      %v494 = vmul.f32 %v302, %v430
      %v495 = vmul.f32 %v303, %v431
      %v496 = vmul.f32 %v304, %v432
      %v497 = vmul.f32 %v305, %v433
      %v498 = vmul.f32 %v306, %v434
      %v499 = vmul.f32 %v307, %v435
      %v500 = vmul.f32 %v308, %v436
      %v501 = vmul.f32 %v309, %v437
      %v502 = vmul.f32 %v310, %v438
      %v503 = vmul.f32 %v311, %v439
      %v504 = vmul.f32 %v312, %v440
      %v505 = vmul.f32 %v313, %v441
      %v506 = vmul.f32 %v314, %v442
      %v507 = vmul.f32 %v315, %v443
      %v508 = vmul.f32 %v316, %v444
      %v509 = vmul.f32 %v317, %v445
      %v510 = vmul.f32 %v318, %v446
      %v511 = vmul.f32 %v319, %v447
      %v512 = vmul.f32 %v320, %v448
      %v513 = vmul.f32 %v321, %v449
      %v514 = vmul.f32 %v322, %v450
      %v515 = vmul.f32 %v323, %v451
      %v516 = vmul.f32 %v324, %v388
      %v517 = vmul.f32 %v325, %v389
      %v518 = vmul.f32 %v326, %v390
      %v519 = vmul.f32 %v327, %v391
      %v520 = vmul.f32 %v328, %v392
      %v521 = vmul.f32 %v329, %v393
      %v522 = vmul.f32 %v330, %v394
      %v523 = vmul.f32 %v331, %v395
      %v524 = vmul.f32 %v332, %v396
      %v525 = vmul.f32 %v333, %v397
      %v526 = vmul.f32 %v334, %v398
      %v527 = vmul.f32 %v335, %v399
      %v528 = vmul.f32 %v336, %v400
      %v529 = vmul.f32 %v337, %v401
      %v530 = vmul.f32 %v338, %v402
      %v531 = vmul.f32 %v339, %v403
      %v532 = vmul.f32 %v340, %v404
      %v533 = vmul.f32 %v341, %v405
      %v534 = vmul.f32 %v342, %v406
      %v535 = vmul.f32 %v343, %v407
      %v536 = vmul.f32 %v344, %v408
      %v537 = vmul.f32 %v345, %v409
      %v538 = vmul.f32 %v346, %v410
      %v539 = vmul.f32 %v347, %v411
      %v540 = vmul.f32 %v348, %v412
      %v541 = vmul.f32 %v349, %v413
      %v542 = vmul.f32 %v350, %v414
      %v543 = vmul.f32 %v351, %v415
      %v544 = vmul.f32 %v352, %v416
      %v545 = vmul.f32 %v353, %v417
      %v546 = vmul.f32 %v354, %v418
      %v547 = vmul.f32 %v355, %v419
      %v548 = vmul.f32 %v356, %v420
      %v549 = vmul.f32 %v357, %v421
      %v550 = vmul.f32 %v358, %v422
      %v551 = vmul.f32 %v359, %v423
      %v552 = vmul.f32 %v360, %v424
      %v553 = vmul.f32 %v361, %v425
      %v554 = vmul.f32 %v362, %v426
      %v555 = vmul.f32 %v363, %v427
      %v556 = vmul.f32 %v364, %v428
      %v557 = vmul.f32 %v365, %v429
      %v558 = vmul.f32 %v366, %v430
      %v559 = vmul.f32 %v367, %v431
      %v560 = vmul.f32 %v368, %v432
      %v561 = vmul.f32 %v369, %v433
      %v562 = vmul.f32 %v370, %v434
      %v563 = vmul.f32 %v371, %v435
      %v564 = vmul.f32 %v372, %v436
      %v565 = vmul.f32 %v373, %v437
      %v566 = vmul.f32 %v374, %v438
      %v567 = vmul.f32 %v375, %v439
      %v568 = vmul.f32 %v376, %v440
      %v569 = vmul.f32 %v377, %v441
      %v570 = vmul.f32 %v378, %v442
      %v571 = vmul.f32 %v379, %v443
      %v572 = vmul.f32 %v380, %v444
      %v573 = vmul.f32 %v381, %v445
      %v574 = vmul.f32 %v382, %v446
      %v575 = vmul.f32 %v383, %v447
      %v576 = vmul.f32 %v384, %v448
      %v577 = vmul.f32 %v385, %v449
      %v578 = vmul.f32 %v386, %v450
      %v579 = vmul.f32 %v387, %v451
      %vm580 = vcmask 400384
      %v581 = vsel %vm580, %v452, 0.0
      %582 = vadd.xlane.f32.xlu0 %v581
      %v583 = vpop.xlane.xlu0 %582
      %v584 = vsel %vm580, %v453, 0.0
      %585 = vadd.xlane.f32.xlu0 %v584
      %v586 = vpop.xlane.xlu0 %585
      %v587 = vsel %vm580, %v454, 0.0
      %588 = vadd.xlane.f32.xlu0 %v587
      %v589 = vpop.xlane.xlu0 %588
      %v590 = vsel %vm580, %v455, 0.0
      %591 = vadd.xlane.f32.xlu0 %v590
      %v592 = vpop.xlane.xlu0 %591
      %v593 = vsel %vm580, %v456, 0.0
      %594 = vadd.xlane.f32.xlu0 %v593
      %v595 = vpop.xlane.xlu0 %594
      %v596 = vsel %vm580, %v457, 0.0
      %597 = vadd.xlane.f32.xlu0 %v596
      %v598 = vpop.xlane.xlu0 %597
      %v599 = vsel %vm580, %v458, 0.0
      %600 = vadd.xlane.f32.xlu0 %v599
      %v601 = vpop.xlane.xlu0 %600
      %v602 = vsel %vm580, %v459, 0.0
      %603 = vadd.xlane.f32.xlu0 %v602
      %v604 = vpop.xlane.xlu0 %603
      %v605 = vsel %vm580, %v460, 0.0
      %606 = vadd.xlane.f32.xlu0 %v605
      %v607 = vpop.xlane.xlu0 %606
      %v608 = vsel %vm580, %v461, 0.0
      %609 = vadd.xlane.f32.xlu0 %v608
      %v610 = vpop.xlane.xlu0 %609
      %v611 = vsel %vm580, %v462, 0.0
      %612 = vadd.xlane.f32.xlu0 %v611
      %v613 = vpop.xlane.xlu0 %612
      %v614 = vsel %vm580, %v463, 0.0
      %615 = vadd.xlane.f32.xlu0 %v614
      %v616 = vpop.xlane.xlu0 %615
      %v617 = vsel %vm580, %v464, 0.0
      %618 = vadd.xlane.f32.xlu0 %v617
      %v619 = vpop.xlane.xlu0 %618
      %v620 = vsel %vm580, %v465, 0.0
      %621 = vadd.xlane.f32.xlu0 %v620
      %v622 = vpop.xlane.xlu0 %621
      %v623 = vsel %vm580, %v466, 0.0
      %624 = vadd.xlane.f32.xlu0 %v623
      %v625 = vpop.xlane.xlu0 %624
      %v626 = vsel %vm580, %v467, 0.0
      %627 = vadd.xlane.f32.xlu0 %v626
      %v628 = vpop.xlane.xlu0 %627
      %v629 = vsel %vm580, %v468, 0.0
      %630 = vadd.xlane.f32.xlu0 %v629
      %v631 = vpop.xlane.xlu0 %630
      %v632 = vsel %vm580, %v469, 0.0
      %633 = vadd.xlane.f32.xlu0 %v632
      %v634 = vpop.xlane.xlu0 %633
      %v635 = vsel %vm580, %v470, 0.0
      %636 = vadd.xlane.f32.xlu0 %v635
      %v637 = vpop.xlane.xlu0 %636
      %v638 = vsel %vm580, %v471, 0.0
      %639 = vadd.xlane.f32.xlu0 %v638
      %v640 = vpop.xlane.xlu0 %639
      %v641 = vsel %vm580, %v472, 0.0
      %642 = vadd.xlane.f32.xlu0 %v641
      %v643 = vpop.xlane.xlu0 %642
      %v644 = vsel %vm580, %v473, 0.0
      %645 = vadd.xlane.f32.xlu0 %v644
      %v646 = vpop.xlane.xlu0 %645
      %v647 = vsel %vm580, %v474, 0.0
      %648 = vadd.xlane.f32.xlu0 %v647
      %v649 = vpop.xlane.xlu0 %648
      %v650 = vsel %vm580, %v475, 0.0
      %651 = vadd.xlane.f32.xlu0 %v650
      %v652 = vpop.xlane.xlu0 %651
      %v653 = vsel %vm580, %v476, 0.0
      %654 = vadd.xlane.f32.xlu0 %v653
      %v655 = vpop.xlane.xlu0 %654
      %v656 = vsel %vm580, %v477, 0.0
      %657 = vadd.xlane.f32.xlu0 %v656
      %v658 = vpop.xlane.xlu0 %657
      %v659 = vsel %vm580, %v478, 0.0
      %660 = vadd.xlane.f32.xlu0 %v659
      %v661 = vpop.xlane.xlu0 %660
      %v662 = vsel %vm580, %v479, 0.0
      %663 = vadd.xlane.f32.xlu0 %v662
      %v664 = vpop.xlane.xlu0 %663
      %v665 = vsel %vm580, %v480, 0.0
      %666 = vadd.xlane.f32.xlu0 %v665
      %v667 = vpop.xlane.xlu0 %666
      %v668 = vsel %vm580, %v481, 0.0
      %669 = vadd.xlane.f32.xlu0 %v668
      %v670 = vpop.xlane.xlu0 %669
      %v671 = vsel %vm580, %v482, 0.0
      %672 = vadd.xlane.f32.xlu0 %v671
      %v673 = vpop.xlane.xlu0 %672
      %v674 = vsel %vm580, %v483, 0.0
      %675 = vadd.xlane.f32.xlu0 %v674
      %v676 = vpop.xlane.xlu0 %675
      %v677 = vsel %vm580, %v484, 0.0
      %678 = vadd.xlane.f32.xlu0 %v677
      %v679 = vpop.xlane.xlu0 %678
      %v680 = vsel %vm580, %v485, 0.0
      %681 = vadd.xlane.f32.xlu0 %v680
      %v682 = vpop.xlane.xlu0 %681
      %v683 = vsel %vm580, %v486, 0.0
      %684 = vadd.xlane.f32.xlu0 %v683
      %v685 = vpop.xlane.xlu0 %684
      %v686 = vsel %vm580, %v487, 0.0
      %687 = vadd.xlane.f32.xlu0 %v686
      %v688 = vpop.xlane.xlu0 %687
      %v689 = vsel %vm580, %v488, 0.0
      %690 = vadd.xlane.f32.xlu0 %v689
      %v691 = vpop.xlane.xlu0 %690
      %v692 = vsel %vm580, %v489, 0.0
      %693 = vadd.xlane.f32.xlu0 %v692
      %v694 = vpop.xlane.xlu0 %693
      %v695 = vsel %vm580, %v490, 0.0
      %696 = vadd.xlane.f32.xlu0 %v695
      %v697 = vpop.xlane.xlu0 %696
      %v698 = vsel %vm580, %v491, 0.0
      %699 = vadd.xlane.f32.xlu0 %v698
      %v700 = vpop.xlane.xlu0 %699
      %v701 = vsel %vm580, %v492, 0.0
      %702 = vadd.xlane.f32.xlu0 %v701
      %v703 = vpop.xlane.xlu0 %702
      %v704 = vsel %vm580, %v493, 0.0
      %705 = vadd.xlane.f32.xlu0 %v704
      %v706 = vpop.xlane.xlu0 %705
      %v707 = vsel %vm580, %v494, 0.0
      %708 = vadd.xlane.f32.xlu0 %v707
      %v709 = vpop.xlane.xlu0 %708
      %v710 = vsel %vm580, %v495, 0.0
      %711 = vadd.xlane.f32.xlu0 %v710
      %v712 = vpop.xlane.xlu0 %711
      %v713 = vsel %vm580, %v496, 0.0
      %714 = vadd.xlane.f32.xlu0 %v713
      %v715 = vpop.xlane.xlu0 %714
      %v716 = vsel %vm580, %v497, 0.0
      %717 = vadd.xlane.f32.xlu0 %v716
      %v718 = vpop.xlane.xlu0 %717
      %v719 = vsel %vm580, %v498, 0.0
      %720 = vadd.xlane.f32.xlu0 %v719
      %v721 = vpop.xlane.xlu0 %720
      %v722 = vsel %vm580, %v499, 0.0
      %723 = vadd.xlane.f32.xlu0 %v722
      %v724 = vpop.xlane.xlu0 %723
      %v725 = vsel %vm580, %v500, 0.0
      %726 = vadd.xlane.f32.xlu0 %v725
      %v727 = vpop.xlane.xlu0 %726
      %v728 = vsel %vm580, %v501, 0.0
      %729 = vadd.xlane.f32.xlu0 %v728
      %v730 = vpop.xlane.xlu0 %729
      %v731 = vsel %vm580, %v502, 0.0
      %732 = vadd.xlane.f32.xlu0 %v731
      %v733 = vpop.xlane.xlu0 %732
      %v734 = vsel %vm580, %v503, 0.0
      %735 = vadd.xlane.f32.xlu0 %v734
      %v736 = vpop.xlane.xlu0 %735
      %v737 = vsel %vm580, %v504, 0.0
      %738 = vadd.xlane.f32.xlu0 %v737
      %v739 = vpop.xlane.xlu0 %738
      %v740 = vsel %vm580, %v505, 0.0
      %741 = vadd.xlane.f32.xlu0 %v740
      %v742 = vpop.xlane.xlu0 %741
      %v743 = vsel %vm580, %v506, 0.0
      %744 = vadd.xlane.f32.xlu0 %v743
      %v745 = vpop.xlane.xlu0 %744
      %v746 = vsel %vm580, %v507, 0.0
      %747 = vadd.xlane.f32.xlu0 %v746
      %v748 = vpop.xlane.xlu0 %747
      %v749 = vsel %vm580, %v508, 0.0
      %750 = vadd.xlane.f32.xlu0 %v749
      %v751 = vpop.xlane.xlu0 %750
      %v752 = vsel %vm580, %v509, 0.0
      %753 = vadd.xlane.f32.xlu0 %v752
      %v754 = vpop.xlane.xlu0 %753
      %v755 = vsel %vm580, %v510, 0.0
      %756 = vadd.xlane.f32.xlu0 %v755
      %v757 = vpop.xlane.xlu0 %756
      %v758 = vsel %vm580, %v511, 0.0
      %759 = vadd.xlane.f32.xlu0 %v758
      %v760 = vpop.xlane.xlu0 %759
      %v761 = vsel %vm580, %v512, 0.0
      %762 = vadd.xlane.f32.xlu0 %v761
      %v763 = vpop.xlane.xlu0 %762
      %v764 = vsel %vm580, %v513, 0.0
      %765 = vadd.xlane.f32.xlu0 %v764
      %v766 = vpop.xlane.xlu0 %765
      %v767 = vsel %vm580, %v514, 0.0
      %768 = vadd.xlane.f32.xlu0 %v767
      %v769 = vpop.xlane.xlu0 %768
      %v770 = vsel %vm580, %v515, 0.0
      %771 = vadd.xlane.f32.xlu0 %v770
      %v772 = vpop.xlane.xlu0 %771
      %v773 = vsel %vm580, %v516, 0.0
      %774 = vadd.xlane.f32.xlu0 %v773
      %v775 = vpop.xlane.xlu0 %774
      %v776 = vsel %vm580, %v517, 0.0
      %777 = vadd.xlane.f32.xlu0 %v776
      %v778 = vpop.xlane.xlu0 %777
      %v779 = vsel %vm580, %v518, 0.0
      %780 = vadd.xlane.f32.xlu0 %v779
      %v781 = vpop.xlane.xlu0 %780
      %v782 = vsel %vm580, %v519, 0.0
      %783 = vadd.xlane.f32.xlu0 %v782
      %v784 = vpop.xlane.xlu0 %783
      %v785 = vsel %vm580, %v520, 0.0
      %786 = vadd.xlane.f32.xlu0 %v785
      %v787 = vpop.xlane.xlu0 %786
      %v788 = vsel %vm580, %v521, 0.0
      %789 = vadd.xlane.f32.xlu0 %v788
      %v790 = vpop.xlane.xlu0 %789
      %v791 = vsel %vm580, %v522, 0.0
      %792 = vadd.xlane.f32.xlu0 %v791
      %v793 = vpop.xlane.xlu0 %792
      %v794 = vsel %vm580, %v523, 0.0
      %795 = vadd.xlane.f32.xlu0 %v794
      %v796 = vpop.xlane.xlu0 %795
      %v797 = vsel %vm580, %v524, 0.0
      %798 = vadd.xlane.f32.xlu0 %v797
      %v799 = vpop.xlane.xlu0 %798
      %v800 = vsel %vm580, %v525, 0.0
      %801 = vadd.xlane.f32.xlu0 %v800
      %v802 = vpop.xlane.xlu0 %801
      %v803 = vsel %vm580, %v526, 0.0
      %804 = vadd.xlane.f32.xlu0 %v803
      %v805 = vpop.xlane.xlu0 %804
      %v806 = vsel %vm580, %v527, 0.0
      %807 = vadd.xlane.f32.xlu0 %v806
      %v808 = vpop.xlane.xlu0 %807
      %v809 = vsel %vm580, %v528, 0.0
      %810 = vadd.xlane.f32.xlu0 %v809
      %v811 = vpop.xlane.xlu0 %810
      %v812 = vsel %vm580, %v529, 0.0
      %813 = vadd.xlane.f32.xlu0 %v812
      %v814 = vpop.xlane.xlu0 %813
      %v815 = vsel %vm580, %v530, 0.0
      %816 = vadd.xlane.f32.xlu0 %v815
      %v817 = vpop.xlane.xlu0 %816
      %v818 = vsel %vm580, %v531, 0.0
      %819 = vadd.xlane.f32.xlu0 %v818
      %v820 = vpop.xlane.xlu0 %819
      %v821 = vsel %vm580, %v532, 0.0
      %822 = vadd.xlane.f32.xlu0 %v821
      %v823 = vpop.xlane.xlu0 %822
      %v824 = vsel %vm580, %v533, 0.0
      %825 = vadd.xlane.f32.xlu0 %v824
      %v826 = vpop.xlane.xlu0 %825
      %v827 = vsel %vm580, %v534, 0.0
      %828 = vadd.xlane.f32.xlu0 %v827
      %v829 = vpop.xlane.xlu0 %828
      %v830 = vsel %vm580, %v535, 0.0
      %831 = vadd.xlane.f32.xlu0 %v830
      %v832 = vpop.xlane.xlu0 %831
      %v833 = vsel %vm580, %v536, 0.0
      %834 = vadd.xlane.f32.xlu0 %v833
      %v835 = vpop.xlane.xlu0 %834
      %v836 = vsel %vm580, %v537, 0.0
      %837 = vadd.xlane.f32.xlu0 %v836
      %v838 = vpop.xlane.xlu0 %837
      %v839 = vsel %vm580, %v538, 0.0
      %840 = vadd.xlane.f32.xlu0 %v839
      %v841 = vpop.xlane.xlu0 %840
      %v842 = vsel %vm580, %v539, 0.0
      %843 = vadd.xlane.f32.xlu0 %v842
      %v844 = vpop.xlane.xlu0 %843
      %v845 = vsel %vm580, %v540, 0.0
      %846 = vadd.xlane.f32.xlu0 %v845
      %v847 = vpop.xlane.xlu0 %846
      %v848 = vsel %vm580, %v541, 0.0
      %849 = vadd.xlane.f32.xlu0 %v848
      %v850 = vpop.xlane.xlu0 %849
      %v851 = vsel %vm580, %v542, 0.0
      %852 = vadd.xlane.f32.xlu0 %v851
      %v853 = vpop.xlane.xlu0 %852
      %v854 = vsel %vm580, %v543, 0.0
      %855 = vadd.xlane.f32.xlu0 %v854
      %v856 = vpop.xlane.xlu0 %855
      %v857 = vsel %vm580, %v544, 0.0
      %858 = vadd.xlane.f32.xlu0 %v857
      %v859 = vpop.xlane.xlu0 %858
      %v860 = vsel %vm580, %v545, 0.0
      %861 = vadd.xlane.f32.xlu0 %v860
      %v862 = vpop.xlane.xlu0 %861
      %v863 = vsel %vm580, %v546, 0.0
      %864 = vadd.xlane.f32.xlu0 %v863
      %v865 = vpop.xlane.xlu0 %864
      %v866 = vsel %vm580, %v547, 0.0
      %867 = vadd.xlane.f32.xlu0 %v866
      %v868 = vpop.xlane.xlu0 %867
      %v869 = vsel %vm580, %v548, 0.0
      %870 = vadd.xlane.f32.xlu0 %v869
      %v871 = vpop.xlane.xlu0 %870
      %v872 = vsel %vm580, %v549, 0.0
      %873 = vadd.xlane.f32.xlu0 %v872
      %v874 = vpop.xlane.xlu0 %873
      %v875 = vsel %vm580, %v550, 0.0
      %876 = vadd.xlane.f32.xlu0 %v875
      %v877 = vpop.xlane.xlu0 %876
      %v878 = vsel %vm580, %v551, 0.0
      %879 = vadd.xlane.f32.xlu0 %v878
      %v880 = vpop.xlane.xlu0 %879
      %v881 = vsel %vm580, %v552, 0.0
      %882 = vadd.xlane.f32.xlu0 %v881
      %v883 = vpop.xlane.xlu0 %882
      %v884 = vsel %vm580, %v553, 0.0
      %885 = vadd.xlane.f32.xlu0 %v884
      %v886 = vpop.xlane.xlu0 %885
      %v887 = vsel %vm580, %v554, 0.0
      %888 = vadd.xlane.f32.xlu0 %v887
      %v889 = vpop.xlane.xlu0 %888
      %v890 = vsel %vm580, %v555, 0.0
      %891 = vadd.xlane.f32.xlu0 %v890
      %v892 = vpop.xlane.xlu0 %891
      %v893 = vsel %vm580, %v556, 0.0
      %894 = vadd.xlane.f32.xlu0 %v893
      %v895 = vpop.xlane.xlu0 %894
      %v896 = vsel %vm580, %v557, 0.0
      %897 = vadd.xlane.f32.xlu0 %v896
      %v898 = vpop.xlane.xlu0 %897
      %v899 = vsel %vm580, %v558, 0.0
      %900 = vadd.xlane.f32.xlu0 %v899
      %v901 = vpop.xlane.xlu0 %900
      %v902 = vsel %vm580, %v559, 0.0
      %903 = vadd.xlane.f32.xlu0 %v902
      %v904 = vpop.xlane.xlu0 %903
      %v905 = vsel %vm580, %v560, 0.0
      %906 = vadd.xlane.f32.xlu0 %v905
      %v907 = vpop.xlane.xlu0 %906
      %v908 = vsel %vm580, %v561, 0.0
      %909 = vadd.xlane.f32.xlu0 %v908
      %v910 = vpop.xlane.xlu0 %909
      %v911 = vsel %vm580, %v562, 0.0
      %912 = vadd.xlane.f32.xlu0 %v911
      %v913 = vpop.xlane.xlu0 %912
      %v914 = vsel %vm580, %v563, 0.0
      %915 = vadd.xlane.f32.xlu0 %v914
      %v916 = vpop.xlane.xlu0 %915
      %v917 = vsel %vm580, %v564, 0.0
      %918 = vadd.xlane.f32.xlu0 %v917
      %v919 = vpop.xlane.xlu0 %918
      %v920 = vsel %vm580, %v565, 0.0
      %921 = vadd.xlane.f32.xlu0 %v920
      %v922 = vpop.xlane.xlu0 %921
      %v923 = vsel %vm580, %v566, 0.0
      %924 = vadd.xlane.f32.xlu0 %v923
      %v925 = vpop.xlane.xlu0 %924
      %v926 = vsel %vm580, %v567, 0.0
      %927 = vadd.xlane.f32.xlu0 %v926
      %v928 = vpop.xlane.xlu0 %927
      %v929 = vsel %vm580, %v568, 0.0
      %930 = vadd.xlane.f32.xlu0 %v929
      %v931 = vpop.xlane.xlu0 %930
      %v932 = vsel %vm580, %v569, 0.0
      %933 = vadd.xlane.f32.xlu0 %v932
      %v934 = vpop.xlane.xlu0 %933
      %v935 = vsel %vm580, %v570, 0.0
      %936 = vadd.xlane.f32.xlu0 %v935
      %v937 = vpop.xlane.xlu0 %936
      %v938 = vsel %vm580, %v571, 0.0
      %939 = vadd.xlane.f32.xlu0 %v938
      %v940 = vpop.xlane.xlu0 %939
      %v941 = vsel %vm580, %v572, 0.0
      %942 = vadd.xlane.f32.xlu0 %v941
      %v943 = vpop.xlane.xlu0 %942
      %v944 = vsel %vm580, %v573, 0.0
      %945 = vadd.xlane.f32.xlu0 %v944
      %v946 = vpop.xlane.xlu0 %945
      %v947 = vsel %vm580, %v574, 0.0
      %948 = vadd.xlane.f32.xlu0 %v947
      %v949 = vpop.xlane.xlu0 %948
      %v950 = vsel %vm580, %v575, 0.0
      %951 = vadd.xlane.f32.xlu0 %v950
      %v952 = vpop.xlane.xlu0 %951
      %v953 = vsel %vm580, %v576, 0.0
      %954 = vadd.xlane.f32.xlu0 %v953
      %v955 = vpop.xlane.xlu0 %954
      %v956 = vsel %vm580, %v577, 0.0
      %957 = vadd.xlane.f32.xlu0 %v956
      %v958 = vpop.xlane.xlu0 %957
      %v959 = vsel %vm580, %v578, 0.0
      %960 = vadd.xlane.f32.xlu0 %v959
      %v961 = vpop.xlane.xlu0 %960
      %v962 = vsel %vm580, %v579, 0.0
      %963 = vadd.xlane.f32.xlu0 %v962
      %v964 = vpop.xlane.xlu0 %963
      %v965 = vld [vmem:[%s2] sm:$0xff]
      %v966 = vld [vmem:[%s2 + $0x8] sm:$0xff]
      %v967 = vld [vmem:[%s2 + $0x10] sm:$0xff]
      %v968 = vld [vmem:[%s2 + $0x18] sm:$0xff]
      %v969 = vld [vmem:[%s2 + $0x20] sm:$0xff]
      %v970 = vld [vmem:[%s2 + $0x28] sm:$0xff]
      %v971 = vld [vmem:[%s2 + $0x30] sm:$0xff]
      %v972 = vld [vmem:[%s2 + $0x38] sm:$0xff]
      %v973 = vld [vmem:[%s2 + $0x40] sm:$0xff]
      %v974 = vld [vmem:[%s2 + $0x48] sm:$0xff]
      %v975 = vld [vmem:[%s2 + $0x50] sm:$0xff]
      %v976 = vld [vmem:[%s2 + $0x58] sm:$0xff]
      %v977 = vld [vmem:[%s2 + $0x60] sm:$0xff]
      %v978 = vld [vmem:[%s2 + $0x68] sm:$0xff]
      %v979 = vld [vmem:[%s2 + $0x70] sm:$0xff]
      %v980 = vld [vmem:[%s2 + $0x78] sm:$0xff]
      %v981 = vld [vmem:[%s2 + $0x80] sm:$0xff]
      %v982 = vld [vmem:[%s2 + $0x88] sm:$0xff]
      %v983 = vld [vmem:[%s2 + $0x90] sm:$0xff]
      %v984 = vld [vmem:[%s2 + $0x98] sm:$0xff]
      %v985 = vld [vmem:[%s2 + $0xa0] sm:$0xff]
      %v986 = vld [vmem:[%s2 + $0xa8] sm:$0xff]
      %v987 = vld [vmem:[%s2 + $0xb0] sm:$0xff]
      %v988 = vld [vmem:[%s2 + $0xb8] sm:$0xff]
      %v989 = vld [vmem:[%s2 + $0xc0] sm:$0xff]
      %v990 = vld [vmem:[%s2 + $0xc8] sm:$0xff]
      %v991 = vld [vmem:[%s2 + $0xd0] sm:$0xff]
      %v992 = vld [vmem:[%s2 + $0xd8] sm:$0xff]
      %v993 = vld [vmem:[%s2 + $0xe0] sm:$0xff]
      %v994 = vld [vmem:[%s2 + $0xe8] sm:$0xff]
      %v995 = vld [vmem:[%s2 + $0xf0] sm:$0xff]
      %v996 = vld [vmem:[%s2 + $0xf8] sm:$0xff]
      %v997 = vld [vmem:[%s2 + $0x100] sm:$0xff]
      %v998 = vld [vmem:[%s2 + $0x108] sm:$0xff]
      %v999 = vld [vmem:[%s2 + $0x110] sm:$0xff]
      %v1000 = vld [vmem:[%s2 + $0x118] sm:$0xff]
      %v1001 = vld [vmem:[%s2 + $0x120] sm:$0xff]
      %v1002 = vld [vmem:[%s2 + $0x128] sm:$0xff]
      %v1003 = vld [vmem:[%s2 + $0x130] sm:$0xff]
      %v1004 = vld [vmem:[%s2 + $0x138] sm:$0xff]
      %v1005 = vld [vmem:[%s2 + $0x140] sm:$0xff]
      %v1006 = vld [vmem:[%s2 + $0x148] sm:$0xff]
      %v1007 = vld [vmem:[%s2 + $0x150] sm:$0xff]
      %v1008 = vld [vmem:[%s2 + $0x158] sm:$0xff]
      %v1009 = vld [vmem:[%s2 + $0x160] sm:$0xff]
      %v1010 = vld [vmem:[%s2 + $0x168] sm:$0xff]
      %v1011 = vld [vmem:[%s2 + $0x170] sm:$0xff]
      %v1012 = vld [vmem:[%s2 + $0x178] sm:$0xff]
      %v1013 = vld [vmem:[%s2 + $0x180] sm:$0xff]
      %v1014 = vld [vmem:[%s2 + $0x188] sm:$0xff]
      %v1015 = vld [vmem:[%s2 + $0x190] sm:$0xff]
      %v1016 = vld [vmem:[%s2 + $0x198] sm:$0xff]
      %v1017 = vld [vmem:[%s2 + $0x1a0] sm:$0xff]
      %v1018 = vld [vmem:[%s2 + $0x1a8] sm:$0xff]
      %v1019 = vld [vmem:[%s2 + $0x1b0] sm:$0xff]
      %v1020 = vld [vmem:[%s2 + $0x1b8] sm:$0xff]
      %v1021 = vld [vmem:[%s2 + $0x1c0] sm:$0xff]
      %v1022 = vld [vmem:[%s2 + $0x1c8] sm:$0xff]
      %v1023 = vld [vmem:[%s2 + $0x1d0] sm:$0xff]
      %v1024 = vld [vmem:[%s2 + $0x1d8] sm:$0xff]
      %v1025 = vld [vmem:[%s2 + $0x1e0] sm:$0xff]
      %v1026 = vld [vmem:[%s2 + $0x1e8] sm:$0xff]
      %v1027 = vld [vmem:[%s2 + $0x1f0] sm:$0xff]
      %v1028 = vld [vmem:[%s2 + $0x1f8] sm:$0xff]
      %v1029 = vld [vmem:[%s3] sm:$0x1]
      %v1031 = vlaneseq
      %v1032 = vshrl.u32 %v1031, 7
      %v1033 = vsub.s32 0, %v1032
      %v1034 = vrot.slane %v1029, %v1033
      %v1164 = vlaneseq
      %v1165 = vand.u32 %v1164, 127
      %v1166 = vlaneseq
      %v1167 = vshrl.u32 %v1166, 7
      %v1168 = vsub.s32 %v1165, %v1167
      %v1169 = vrot.slane %v583, %v1168
      %v1170 = vadd.s32 %v1165, 4294967288
      %v1171 = vlaneseq
      %v1172 = vshrl.u32 %v1171, 7
      %v1173 = vsub.s32 %v1170, %v1172
      %v1174 = vrot.slane %v586, %v1173
      %vm1175 = vcmask 130112
      %v1176 = vsel %vm1175, %v1174, %v1169
      %v1177 = vadd.s32 %v1165, 4294967280
      %v1178 = vlaneseq
      %v1179 = vshrl.u32 %v1178, 7
      %v1180 = vsub.s32 %v1177, %v1179
      %v1181 = vrot.slane %v589, %v1180
      %vm1182 = vcmask 195712
      %v1183 = vsel %vm1182, %v1181, %v1176
      %v1184 = vadd.s32 %v1165, 4294967272
      %v1185 = vlaneseq
      %v1186 = vshrl.u32 %v1185, 7
      %v1187 = vsub.s32 %v1184, %v1186
      %v1188 = vrot.slane %v592, %v1187
      %vm1189 = vcmask 261312
      %v1190 = vsel %vm1189, %v1188, %v1183
      %v1191 = vadd.s32 %v1165, 4294967264
      %v1192 = vlaneseq
      %v1193 = vshrl.u32 %v1192, 7
      %v1194 = vsub.s32 %v1191, %v1193
      %v1195 = vrot.slane %v595, %v1194
      %vm1196 = vcmask 326912
      %v1197 = vsel %vm1196, %v1195, %v1190
      %v1198 = vadd.s32 %v1165, 4294967256
      %v1199 = vlaneseq
      %v1200 = vshrl.u32 %v1199, 7
      %v1201 = vsub.s32 %v1198, %v1200
      %v1202 = vrot.slane %v598, %v1201
      %vm1203 = vcmask 392512
      %v1204 = vsel %vm1203, %v1202, %v1197
      %v1205 = vadd.s32 %v1165, 4294967248
      %v1206 = vlaneseq
      %v1207 = vshrl.u32 %v1206, 7
      %v1208 = vsub.s32 %v1205, %v1207
      %v1209 = vrot.slane %v601, %v1208
      %vm1210 = vcmask 458112
      %v1211 = vsel %vm1210, %v1209, %v1204
      %v1212 = vadd.s32 %v1165, 4294967240
      %v1213 = vlaneseq
      %v1214 = vshrl.u32 %v1213, 7
      %v1215 = vsub.s32 %v1212, %v1214
      %v1216 = vrot.slane %v604, %v1215
      %vm1217 = vcmask 523712
      %v1218 = vsel %vm1217, %v1216, %v1211
      %v1219 = vadd.s32 %v1165, 4294967232
      %v1220 = vlaneseq
      %v1221 = vshrl.u32 %v1220, 7
      %v1222 = vsub.s32 %v1219, %v1221
      %v1223 = vrot.slane %v607, %v1222
      %vm1224 = vcmask 589312
      %v1225 = vsel %vm1224, %v1223, %v1218
      %v1226 = vadd.s32 %v1165, 4294967224
      %v1227 = vlaneseq
      %v1228 = vshrl.u32 %v1227, 7
      %v1229 = vsub.s32 %v1226, %v1228
      %v1230 = vrot.slane %v610, %v1229
      %vm1231 = vcmask 654912
      %v1232 = vsel %vm1231, %v1230, %v1225
      %v1233 = vadd.s32 %v1165, 4294967216
      %v1234 = vlaneseq
      %v1235 = vshrl.u32 %v1234, 7
      %v1236 = vsub.s32 %v1233, %v1235
      %v1237 = vrot.slane %v613, %v1236
      %vm1238 = vcmask 720512
      %v1239 = vsel %vm1238, %v1237, %v1232
      %v1240 = vadd.s32 %v1165, 4294967208
      %v1241 = vlaneseq
      %v1242 = vshrl.u32 %v1241, 7
      %v1243 = vsub.s32 %v1240, %v1242
      %v1244 = vrot.slane %v616, %v1243
      %vm1245 = vcmask 786112
      %v1246 = vsel %vm1245, %v1244, %v1239
      %v1247 = vadd.s32 %v1165, 4294967200
      %v1248 = vlaneseq
      %v1249 = vshrl.u32 %v1248, 7
      %v1250 = vsub.s32 %v1247, %v1249
      %v1251 = vrot.slane %v619, %v1250
      %vm1252 = vcmask 851712
      %v1253 = vsel %vm1252, %v1251, %v1246
      %v1254 = vadd.s32 %v1165, 4294967192
      %v1255 = vlaneseq
      %v1256 = vshrl.u32 %v1255, 7
      %v1257 = vsub.s32 %v1254, %v1256
      %v1258 = vrot.slane %v622, %v1257
      %vm1259 = vcmask 917312
      %v1260 = vsel %vm1259, %v1258, %v1253
      %v1261 = vadd.s32 %v1165, 4294967184
      %v1262 = vlaneseq
      %v1263 = vshrl.u32 %v1262, 7
      %v1264 = vsub.s32 %v1261, %v1263
      %v1265 = vrot.slane %v625, %v1264
      %vm1266 = vcmask 982912
      %v1267 = vsel %vm1266, %v1265, %v1260
      %v1268 = vadd.s32 %v1165, 4294967176
      %v1269 = vlaneseq
      %v1270 = vshrl.u32 %v1269, 7
      %v1271 = vsub.s32 %v1268, %v1270
      %v1272 = vrot.slane %v628, %v1271
      %vm1273 = vcmask 1048512
      %v1274 = vsel %vm1273, %v1272, %v1267
      %v1275 = vlaneseq
      %v1276 = vshrl.u32 %v1275, 7
      %v1277 = vsub.s32 %v1165, %v1276
      %v1278 = vrot.slane %v631, %v1277
      %v1279 = vlaneseq
      %v1280 = vshrl.u32 %v1279, 7
      %v1281 = vsub.s32 %v1170, %v1280
      %v1282 = vrot.slane %v634, %v1281
      %v1283 = vsel %vm1175, %v1282, %v1278
      %v1284 = vlaneseq
      %v1285 = vshrl.u32 %v1284, 7
      %v1286 = vsub.s32 %v1177, %v1285
      %v1287 = vrot.slane %v637, %v1286
      %v1288 = vsel %vm1182, %v1287, %v1283
      %v1289 = vlaneseq
      %v1290 = vshrl.u32 %v1289, 7
      %v1291 = vsub.s32 %v1184, %v1290
      %v1292 = vrot.slane %v640, %v1291
      %v1293 = vsel %vm1189, %v1292, %v1288
      %v1294 = vlaneseq
      %v1295 = vshrl.u32 %v1294, 7
      %v1296 = vsub.s32 %v1191, %v1295
      %v1297 = vrot.slane %v643, %v1296
      %v1298 = vsel %vm1196, %v1297, %v1293
      %v1299 = vlaneseq
      %v1300 = vshrl.u32 %v1299, 7
      %v1301 = vsub.s32 %v1198, %v1300
      %v1302 = vrot.slane %v646, %v1301
      %v1303 = vsel %vm1203, %v1302, %v1298
      %v1304 = vlaneseq
      %v1305 = vshrl.u32 %v1304, 7
      %v1306 = vsub.s32 %v1205, %v1305
      %v1307 = vrot.slane %v649, %v1306
      %v1308 = vsel %vm1210, %v1307, %v1303
      %v1309 = vlaneseq
      %v1310 = vshrl.u32 %v1309, 7
      %v1311 = vsub.s32 %v1212, %v1310
      %v1312 = vrot.slane %v652, %v1311
      %v1313 = vsel %vm1217, %v1312, %v1308
      %v1314 = vlaneseq
      %v1315 = vshrl.u32 %v1314, 7
      %v1316 = vsub.s32 %v1219, %v1315
      %v1317 = vrot.slane %v655, %v1316
      %v1318 = vsel %vm1224, %v1317, %v1313
      %v1319 = vlaneseq
      %v1320 = vshrl.u32 %v1319, 7
      %v1321 = vsub.s32 %v1226, %v1320
      %v1322 = vrot.slane %v658, %v1321
      %v1323 = vsel %vm1231, %v1322, %v1318
      %v1324 = vlaneseq
      %v1325 = vshrl.u32 %v1324, 7
      %v1326 = vsub.s32 %v1233, %v1325
      %v1327 = vrot.slane %v661, %v1326
      %v1328 = vsel %vm1238, %v1327, %v1323
      %v1329 = vlaneseq
      %v1330 = vshrl.u32 %v1329, 7
      %v1331 = vsub.s32 %v1240, %v1330
      %v1332 = vrot.slane %v664, %v1331
      %v1333 = vsel %vm1245, %v1332, %v1328
      %v1334 = vlaneseq
      %v1335 = vshrl.u32 %v1334, 7
      %v1336 = vsub.s32 %v1247, %v1335
      %v1337 = vrot.slane %v667, %v1336
      %v1338 = vsel %vm1252, %v1337, %v1333
      %v1339 = vlaneseq
      %v1340 = vshrl.u32 %v1339, 7
      %v1341 = vsub.s32 %v1254, %v1340
      %v1342 = vrot.slane %v670, %v1341
      %v1343 = vsel %vm1259, %v1342, %v1338
      %v1344 = vlaneseq
      %v1345 = vshrl.u32 %v1344, 7
      %v1346 = vsub.s32 %v1261, %v1345
      %v1347 = vrot.slane %v673, %v1346
      %v1348 = vsel %vm1266, %v1347, %v1343
      %v1349 = vlaneseq
      %v1350 = vshrl.u32 %v1349, 7
      %v1351 = vsub.s32 %v1268, %v1350
      %v1352 = vrot.slane %v676, %v1351
      %v1353 = vsel %vm1273, %v1352, %v1348
      %v1354 = vlaneseq
      %v1355 = vshrl.u32 %v1354, 7
      %v1356 = vsub.s32 %v1165, %v1355
      %v1357 = vrot.slane %v679, %v1356
      %v1358 = vlaneseq
      %v1359 = vshrl.u32 %v1358, 7
      %v1360 = vsub.s32 %v1170, %v1359
      %v1361 = vrot.slane %v682, %v1360
      %v1362 = vsel %vm1175, %v1361, %v1357
      %v1363 = vlaneseq
      %v1364 = vshrl.u32 %v1363, 7
      %v1365 = vsub.s32 %v1177, %v1364
      %v1366 = vrot.slane %v685, %v1365
      %v1367 = vsel %vm1182, %v1366, %v1362
      %v1368 = vlaneseq
      %v1369 = vshrl.u32 %v1368, 7
      %v1370 = vsub.s32 %v1184, %v1369
      %v1371 = vrot.slane %v688, %v1370
      %v1372 = vsel %vm1189, %v1371, %v1367
      %v1373 = vlaneseq
      %v1374 = vshrl.u32 %v1373, 7
      %v1375 = vsub.s32 %v1191, %v1374
      %v1376 = vrot.slane %v691, %v1375
      %v1377 = vsel %vm1196, %v1376, %v1372
      %v1378 = vlaneseq
      %v1379 = vshrl.u32 %v1378, 7
      %v1380 = vsub.s32 %v1198, %v1379
      %v1381 = vrot.slane %v694, %v1380
      %v1382 = vsel %vm1203, %v1381, %v1377
      %v1383 = vlaneseq
      %v1384 = vshrl.u32 %v1383, 7
      %v1385 = vsub.s32 %v1205, %v1384
      %v1386 = vrot.slane %v697, %v1385
      %v1387 = vsel %vm1210, %v1386, %v1382
      %v1388 = vlaneseq
      %v1389 = vshrl.u32 %v1388, 7
      %v1390 = vsub.s32 %v1212, %v1389
      %v1391 = vrot.slane %v700, %v1390
      %v1392 = vsel %vm1217, %v1391, %v1387
      %v1393 = vlaneseq
      %v1394 = vshrl.u32 %v1393, 7
      %v1395 = vsub.s32 %v1219, %v1394
      %v1396 = vrot.slane %v703, %v1395
      %v1397 = vsel %vm1224, %v1396, %v1392
      %v1398 = vlaneseq
      %v1399 = vshrl.u32 %v1398, 7
      %v1400 = vsub.s32 %v1226, %v1399
      %v1401 = vrot.slane %v706, %v1400
      %v1402 = vsel %vm1231, %v1401, %v1397
      %v1403 = vlaneseq
      %v1404 = vshrl.u32 %v1403, 7
      %v1405 = vsub.s32 %v1233, %v1404
      %v1406 = vrot.slane %v709, %v1405
      %v1407 = vsel %vm1238, %v1406, %v1402
      %v1408 = vlaneseq
      %v1409 = vshrl.u32 %v1408, 7
      %v1410 = vsub.s32 %v1240, %v1409
      %v1411 = vrot.slane %v712, %v1410
      %v1412 = vsel %vm1245, %v1411, %v1407
      %v1413 = vlaneseq
      %v1414 = vshrl.u32 %v1413, 7
      %v1415 = vsub.s32 %v1247, %v1414
      %v1416 = vrot.slane %v715, %v1415
      %v1417 = vsel %vm1252, %v1416, %v1412
      %v1418 = vlaneseq
      %v1419 = vshrl.u32 %v1418, 7
      %v1420 = vsub.s32 %v1254, %v1419
      %v1421 = vrot.slane %v718, %v1420
      %v1422 = vsel %vm1259, %v1421, %v1417
      %v1423 = vlaneseq
      %v1424 = vshrl.u32 %v1423, 7
      %v1425 = vsub.s32 %v1261, %v1424
      %v1426 = vrot.slane %v721, %v1425
      %v1427 = vsel %vm1266, %v1426, %v1422
      %v1428 = vlaneseq
      %v1429 = vshrl.u32 %v1428, 7
      %v1430 = vsub.s32 %v1268, %v1429
      %v1431 = vrot.slane %v724, %v1430
      %v1432 = vsel %vm1273, %v1431, %v1427
      %v1433 = vlaneseq
      %v1434 = vshrl.u32 %v1433, 7
      %v1435 = vsub.s32 %v1165, %v1434
      %v1436 = vrot.slane %v727, %v1435
      %v1437 = vlaneseq
      %v1438 = vshrl.u32 %v1437, 7
      %v1439 = vsub.s32 %v1170, %v1438
      %v1440 = vrot.slane %v730, %v1439
      %v1441 = vsel %vm1175, %v1440, %v1436
      %v1442 = vlaneseq
      %v1443 = vshrl.u32 %v1442, 7
      %v1444 = vsub.s32 %v1177, %v1443
      %v1445 = vrot.slane %v733, %v1444
      %v1446 = vsel %vm1182, %v1445, %v1441
      %v1447 = vlaneseq
      %v1448 = vshrl.u32 %v1447, 7
      %v1449 = vsub.s32 %v1184, %v1448
      %v1450 = vrot.slane %v736, %v1449
      %v1451 = vsel %vm1189, %v1450, %v1446
      %v1452 = vlaneseq
      %v1453 = vshrl.u32 %v1452, 7
      %v1454 = vsub.s32 %v1191, %v1453
      %v1455 = vrot.slane %v739, %v1454
      %v1456 = vsel %vm1196, %v1455, %v1451
      %v1457 = vlaneseq
      %v1458 = vshrl.u32 %v1457, 7
      %v1459 = vsub.s32 %v1198, %v1458
      %v1460 = vrot.slane %v742, %v1459
      %v1461 = vsel %vm1203, %v1460, %v1456
      %v1462 = vlaneseq
      %v1463 = vshrl.u32 %v1462, 7
      %v1464 = vsub.s32 %v1205, %v1463
      %v1465 = vrot.slane %v745, %v1464
      %v1466 = vsel %vm1210, %v1465, %v1461
      %v1467 = vlaneseq
      %v1468 = vshrl.u32 %v1467, 7
      %v1469 = vsub.s32 %v1212, %v1468
      %v1470 = vrot.slane %v748, %v1469
      %v1471 = vsel %vm1217, %v1470, %v1466
      %v1472 = vlaneseq
      %v1473 = vshrl.u32 %v1472, 7
      %v1474 = vsub.s32 %v1219, %v1473
      %v1475 = vrot.slane %v751, %v1474
      %v1476 = vsel %vm1224, %v1475, %v1471
      %v1477 = vlaneseq
      %v1478 = vshrl.u32 %v1477, 7
      %v1479 = vsub.s32 %v1226, %v1478
      %v1480 = vrot.slane %v754, %v1479
      %v1481 = vsel %vm1231, %v1480, %v1476
      %v1482 = vlaneseq
      %v1483 = vshrl.u32 %v1482, 7
      %v1484 = vsub.s32 %v1233, %v1483
      %v1485 = vrot.slane %v757, %v1484
      %v1486 = vsel %vm1238, %v1485, %v1481
      %v1487 = vlaneseq
      %v1488 = vshrl.u32 %v1487, 7
      %v1489 = vsub.s32 %v1240, %v1488
      %v1490 = vrot.slane %v760, %v1489
      %v1491 = vsel %vm1245, %v1490, %v1486
      %v1492 = vlaneseq
      %v1493 = vshrl.u32 %v1492, 7
      %v1494 = vsub.s32 %v1247, %v1493
      %v1495 = vrot.slane %v763, %v1494
      %v1496 = vsel %vm1252, %v1495, %v1491
      %v1497 = vlaneseq
      %v1498 = vshrl.u32 %v1497, 7
      %v1499 = vsub.s32 %v1254, %v1498
      %v1500 = vrot.slane %v766, %v1499
      %v1501 = vsel %vm1259, %v1500, %v1496
      %v1502 = vlaneseq
      %v1503 = vshrl.u32 %v1502, 7
      %v1504 = vsub.s32 %v1261, %v1503
      %v1505 = vrot.slane %v769, %v1504
      %v1506 = vsel %vm1266, %v1505, %v1501
      %v1507 = vlaneseq
      %v1508 = vshrl.u32 %v1507, 7
      %v1509 = vsub.s32 %v1268, %v1508
      %v1510 = vrot.slane %v772, %v1509
      %v1511 = vsel %vm1273, %v1510, %v1506
      %v1512 = vlaneseq
      %v1513 = vshrl.u32 %v1512, 7
      %v1514 = vsub.s32 %v1165, %v1513
      %v1515 = vrot.slane %v775, %v1514
      %v1516 = vlaneseq
      %v1517 = vshrl.u32 %v1516, 7
      %v1518 = vsub.s32 %v1170, %v1517
      %v1519 = vrot.slane %v778, %v1518
      %v1520 = vsel %vm1175, %v1519, %v1515
      %v1521 = vlaneseq
      %v1522 = vshrl.u32 %v1521, 7
      %v1523 = vsub.s32 %v1177, %v1522
      %v1524 = vrot.slane %v781, %v1523
      %v1525 = vsel %vm1182, %v1524, %v1520
      %v1526 = vlaneseq
      %v1527 = vshrl.u32 %v1526, 7
      %v1528 = vsub.s32 %v1184, %v1527
      %v1529 = vrot.slane %v784, %v1528
      %v1530 = vsel %vm1189, %v1529, %v1525
      %v1531 = vlaneseq
      %v1532 = vshrl.u32 %v1531, 7
      %v1533 = vsub.s32 %v1191, %v1532
      %v1534 = vrot.slane %v787, %v1533
      %v1535 = vsel %vm1196, %v1534, %v1530
      %v1536 = vlaneseq
      %v1537 = vshrl.u32 %v1536, 7
      %v1538 = vsub.s32 %v1198, %v1537
      %v1539 = vrot.slane %v790, %v1538
      %v1540 = vsel %vm1203, %v1539, %v1535
      %v1541 = vlaneseq
      %v1542 = vshrl.u32 %v1541, 7
      %v1543 = vsub.s32 %v1205, %v1542
      %v1544 = vrot.slane %v793, %v1543
      %v1545 = vsel %vm1210, %v1544, %v1540
      %v1546 = vlaneseq
      %v1547 = vshrl.u32 %v1546, 7
      %v1548 = vsub.s32 %v1212, %v1547
      %v1549 = vrot.slane %v796, %v1548
      %v1550 = vsel %vm1217, %v1549, %v1545
      %v1551 = vlaneseq
      %v1552 = vshrl.u32 %v1551, 7
      %v1553 = vsub.s32 %v1219, %v1552
      %v1554 = vrot.slane %v799, %v1553
      %v1555 = vsel %vm1224, %v1554, %v1550
      %v1556 = vlaneseq
      %v1557 = vshrl.u32 %v1556, 7
      %v1558 = vsub.s32 %v1226, %v1557
      %v1559 = vrot.slane %v802, %v1558
      %v1560 = vsel %vm1231, %v1559, %v1555
      %v1561 = vlaneseq
      %v1562 = vshrl.u32 %v1561, 7
      %v1563 = vsub.s32 %v1233, %v1562
      %v1564 = vrot.slane %v805, %v1563
      %v1565 = vsel %vm1238, %v1564, %v1560
      %v1566 = vlaneseq
      %v1567 = vshrl.u32 %v1566, 7
      %v1568 = vsub.s32 %v1240, %v1567
      %v1569 = vrot.slane %v808, %v1568
      %v1570 = vsel %vm1245, %v1569, %v1565
      %v1571 = vlaneseq
      %v1572 = vshrl.u32 %v1571, 7
      %v1573 = vsub.s32 %v1247, %v1572
      %v1574 = vrot.slane %v811, %v1573
      %v1575 = vsel %vm1252, %v1574, %v1570
      %v1576 = vlaneseq
      %v1577 = vshrl.u32 %v1576, 7
      %v1578 = vsub.s32 %v1254, %v1577
      %v1579 = vrot.slane %v814, %v1578
      %v1580 = vsel %vm1259, %v1579, %v1575
      %v1581 = vlaneseq
      %v1582 = vshrl.u32 %v1581, 7
      %v1583 = vsub.s32 %v1261, %v1582
      %v1584 = vrot.slane %v817, %v1583
      %v1585 = vsel %vm1266, %v1584, %v1580
      %v1586 = vlaneseq
      %v1587 = vshrl.u32 %v1586, 7
      %v1588 = vsub.s32 %v1268, %v1587
      %v1589 = vrot.slane %v820, %v1588
      %v1590 = vsel %vm1273, %v1589, %v1585
      %v1591 = vlaneseq
      %v1592 = vshrl.u32 %v1591, 7
      %v1593 = vsub.s32 %v1165, %v1592
      %v1594 = vrot.slane %v823, %v1593
      %v1595 = vlaneseq
      %v1596 = vshrl.u32 %v1595, 7
      %v1597 = vsub.s32 %v1170, %v1596
      %v1598 = vrot.slane %v826, %v1597
      %v1599 = vsel %vm1175, %v1598, %v1594
      %v1600 = vlaneseq
      %v1601 = vshrl.u32 %v1600, 7
      %v1602 = vsub.s32 %v1177, %v1601
      %v1603 = vrot.slane %v829, %v1602
      %v1604 = vsel %vm1182, %v1603, %v1599
      %v1605 = vlaneseq
      %v1606 = vshrl.u32 %v1605, 7
      %v1607 = vsub.s32 %v1184, %v1606
      %v1608 = vrot.slane %v832, %v1607
      %v1609 = vsel %vm1189, %v1608, %v1604
      %v1610 = vlaneseq
      %v1611 = vshrl.u32 %v1610, 7
      %v1612 = vsub.s32 %v1191, %v1611
      %v1613 = vrot.slane %v835, %v1612
      %v1614 = vsel %vm1196, %v1613, %v1609
      %v1615 = vlaneseq
      %v1616 = vshrl.u32 %v1615, 7
      %v1617 = vsub.s32 %v1198, %v1616
      %v1618 = vrot.slane %v838, %v1617
      %v1619 = vsel %vm1203, %v1618, %v1614
      %v1620 = vlaneseq
      %v1621 = vshrl.u32 %v1620, 7
      %v1622 = vsub.s32 %v1205, %v1621
      %v1623 = vrot.slane %v841, %v1622
      %v1624 = vsel %vm1210, %v1623, %v1619
      %v1625 = vlaneseq
      %v1626 = vshrl.u32 %v1625, 7
      %v1627 = vsub.s32 %v1212, %v1626
      %v1628 = vrot.slane %v844, %v1627
      %v1629 = vsel %vm1217, %v1628, %v1624
      %v1630 = vlaneseq
      %v1631 = vshrl.u32 %v1630, 7
      %v1632 = vsub.s32 %v1219, %v1631
      %v1633 = vrot.slane %v847, %v1632
      %v1634 = vsel %vm1224, %v1633, %v1629
      %v1635 = vlaneseq
      %v1636 = vshrl.u32 %v1635, 7
      %v1637 = vsub.s32 %v1226, %v1636
      %v1638 = vrot.slane %v850, %v1637
      %v1639 = vsel %vm1231, %v1638, %v1634
      %v1640 = vlaneseq
      %v1641 = vshrl.u32 %v1640, 7
      %v1642 = vsub.s32 %v1233, %v1641
      %v1643 = vrot.slane %v853, %v1642
      %v1644 = vsel %vm1238, %v1643, %v1639
      %v1645 = vlaneseq
      %v1646 = vshrl.u32 %v1645, 7
      %v1647 = vsub.s32 %v1240, %v1646
      %v1648 = vrot.slane %v856, %v1647
      %v1649 = vsel %vm1245, %v1648, %v1644
      %v1650 = vlaneseq
      %v1651 = vshrl.u32 %v1650, 7
      %v1652 = vsub.s32 %v1247, %v1651
      %v1653 = vrot.slane %v859, %v1652
      %v1654 = vsel %vm1252, %v1653, %v1649
      %v1655 = vlaneseq
      %v1656 = vshrl.u32 %v1655, 7
      %v1657 = vsub.s32 %v1254, %v1656
      %v1658 = vrot.slane %v862, %v1657
      %v1659 = vsel %vm1259, %v1658, %v1654
      %v1660 = vlaneseq
      %v1661 = vshrl.u32 %v1660, 7
      %v1662 = vsub.s32 %v1261, %v1661
      %v1663 = vrot.slane %v865, %v1662
      %v1664 = vsel %vm1266, %v1663, %v1659
      %v1665 = vlaneseq
      %v1666 = vshrl.u32 %v1665, 7
      %v1667 = vsub.s32 %v1268, %v1666
      %v1668 = vrot.slane %v868, %v1667
      %v1669 = vsel %vm1273, %v1668, %v1664
      %v1670 = vlaneseq
      %v1671 = vshrl.u32 %v1670, 7
      %v1672 = vsub.s32 %v1165, %v1671
      %v1673 = vrot.slane %v871, %v1672
      %v1674 = vlaneseq
      %v1675 = vshrl.u32 %v1674, 7
      %v1676 = vsub.s32 %v1170, %v1675
      %v1677 = vrot.slane %v874, %v1676
      %v1678 = vsel %vm1175, %v1677, %v1673
      %v1679 = vlaneseq
      %v1680 = vshrl.u32 %v1679, 7
      %v1681 = vsub.s32 %v1177, %v1680
      %v1682 = vrot.slane %v877, %v1681
      %v1683 = vsel %vm1182, %v1682, %v1678
      %v1684 = vlaneseq
      %v1685 = vshrl.u32 %v1684, 7
      %v1686 = vsub.s32 %v1184, %v1685
      %v1687 = vrot.slane %v880, %v1686
      %v1688 = vsel %vm1189, %v1687, %v1683
      %v1689 = vlaneseq
      %v1690 = vshrl.u32 %v1689, 7
      %v1691 = vsub.s32 %v1191, %v1690
      %v1692 = vrot.slane %v883, %v1691
      %v1693 = vsel %vm1196, %v1692, %v1688
      %v1694 = vlaneseq
      %v1695 = vshrl.u32 %v1694, 7
      %v1696 = vsub.s32 %v1198, %v1695
      %v1697 = vrot.slane %v886, %v1696
      %v1698 = vsel %vm1203, %v1697, %v1693
      %v1699 = vlaneseq
      %v1700 = vshrl.u32 %v1699, 7
      %v1701 = vsub.s32 %v1205, %v1700
      %v1702 = vrot.slane %v889, %v1701
      %v1703 = vsel %vm1210, %v1702, %v1698
      %v1704 = vlaneseq
      %v1705 = vshrl.u32 %v1704, 7
      %v1706 = vsub.s32 %v1212, %v1705
      %v1707 = vrot.slane %v892, %v1706
      %v1708 = vsel %vm1217, %v1707, %v1703
      %v1709 = vlaneseq
      %v1710 = vshrl.u32 %v1709, 7
      %v1711 = vsub.s32 %v1219, %v1710
      %v1712 = vrot.slane %v895, %v1711
      %v1713 = vsel %vm1224, %v1712, %v1708
      %v1714 = vlaneseq
      %v1715 = vshrl.u32 %v1714, 7
      %v1716 = vsub.s32 %v1226, %v1715
      %v1717 = vrot.slane %v898, %v1716
      %v1718 = vsel %vm1231, %v1717, %v1713
      %v1719 = vlaneseq
      %v1720 = vshrl.u32 %v1719, 7
      %v1721 = vsub.s32 %v1233, %v1720
      %v1722 = vrot.slane %v901, %v1721
      %v1723 = vsel %vm1238, %v1722, %v1718
      %v1724 = vlaneseq
      %v1725 = vshrl.u32 %v1724, 7
      %v1726 = vsub.s32 %v1240, %v1725
      %v1727 = vrot.slane %v904, %v1726
      %v1728 = vsel %vm1245, %v1727, %v1723
      %v1729 = vlaneseq
      %v1730 = vshrl.u32 %v1729, 7
      %v1731 = vsub.s32 %v1247, %v1730
      %v1732 = vrot.slane %v907, %v1731
      %v1733 = vsel %vm1252, %v1732, %v1728
      %v1734 = vlaneseq
      %v1735 = vshrl.u32 %v1734, 7
      %v1736 = vsub.s32 %v1254, %v1735
      %v1737 = vrot.slane %v910, %v1736
      %v1738 = vsel %vm1259, %v1737, %v1733
      %v1739 = vlaneseq
      %v1740 = vshrl.u32 %v1739, 7
      %v1741 = vsub.s32 %v1261, %v1740
      %v1742 = vrot.slane %v913, %v1741
      %v1743 = vsel %vm1266, %v1742, %v1738
      %v1744 = vlaneseq
      %v1745 = vshrl.u32 %v1744, 7
      %v1746 = vsub.s32 %v1268, %v1745
      %v1747 = vrot.slane %v916, %v1746
      %v1748 = vsel %vm1273, %v1747, %v1743
      %v1749 = vlaneseq
      %v1750 = vshrl.u32 %v1749, 7
      %v1751 = vsub.s32 %v1165, %v1750
      %v1752 = vrot.slane %v919, %v1751
      %v1753 = vlaneseq
      %v1754 = vshrl.u32 %v1753, 7
      %v1755 = vsub.s32 %v1170, %v1754
      %v1756 = vrot.slane %v922, %v1755
      %v1757 = vsel %vm1175, %v1756, %v1752
      %v1758 = vlaneseq
      %v1759 = vshrl.u32 %v1758, 7
      %v1760 = vsub.s32 %v1177, %v1759
      %v1761 = vrot.slane %v925, %v1760
      %v1762 = vsel %vm1182, %v1761, %v1757
      %v1763 = vlaneseq
      %v1764 = vshrl.u32 %v1763, 7
      %v1765 = vsub.s32 %v1184, %v1764
      %v1766 = vrot.slane %v928, %v1765
      %v1767 = vsel %vm1189, %v1766, %v1762
      %v1768 = vlaneseq
      %v1769 = vshrl.u32 %v1768, 7
      %v1770 = vsub.s32 %v1191, %v1769
      %v1771 = vrot.slane %v931, %v1770
      %v1772 = vsel %vm1196, %v1771, %v1767
      %v1773 = vlaneseq
      %v1774 = vshrl.u32 %v1773, 7
      %v1775 = vsub.s32 %v1198, %v1774
      %v1776 = vrot.slane %v934, %v1775
      %v1777 = vsel %vm1203, %v1776, %v1772
      %v1778 = vlaneseq
      %v1779 = vshrl.u32 %v1778, 7
      %v1780 = vsub.s32 %v1205, %v1779
      %v1781 = vrot.slane %v937, %v1780
      %v1782 = vsel %vm1210, %v1781, %v1777
      %v1783 = vlaneseq
      %v1784 = vshrl.u32 %v1783, 7
      %v1785 = vsub.s32 %v1212, %v1784
      %v1786 = vrot.slane %v940, %v1785
      %v1787 = vsel %vm1217, %v1786, %v1782
      %v1788 = vlaneseq
      %v1789 = vshrl.u32 %v1788, 7
      %v1790 = vsub.s32 %v1219, %v1789
      %v1791 = vrot.slane %v943, %v1790
      %v1792 = vsel %vm1224, %v1791, %v1787
      %v1793 = vlaneseq
      %v1794 = vshrl.u32 %v1793, 7
      %v1795 = vsub.s32 %v1226, %v1794
      %v1796 = vrot.slane %v946, %v1795
      %v1797 = vsel %vm1231, %v1796, %v1792
      %v1798 = vlaneseq
      %v1799 = vshrl.u32 %v1798, 7
      %v1800 = vsub.s32 %v1233, %v1799
      %v1801 = vrot.slane %v949, %v1800
      %v1802 = vsel %vm1238, %v1801, %v1797
      %v1803 = vlaneseq
      %v1804 = vshrl.u32 %v1803, 7
      %v1805 = vsub.s32 %v1240, %v1804
      %v1806 = vrot.slane %v952, %v1805
      %v1807 = vsel %vm1245, %v1806, %v1802
      %v1808 = vlaneseq
      %v1809 = vshrl.u32 %v1808, 7
      %v1810 = vsub.s32 %v1247, %v1809
      %v1811 = vrot.slane %v955, %v1810
      %v1812 = vsel %vm1252, %v1811, %v1807
      %v1813 = vlaneseq
      %v1814 = vshrl.u32 %v1813, 7
      %v1815 = vsub.s32 %v1254, %v1814
      %v1816 = vrot.slane %v958, %v1815
      %v1817 = vsel %vm1259, %v1816, %v1812
      %v1818 = vlaneseq
      %v1819 = vshrl.u32 %v1818, 7
      %v1820 = vsub.s32 %v1261, %v1819
      %v1821 = vrot.slane %v961, %v1820
      %v1822 = vsel %vm1266, %v1821, %v1817
      %v1823 = vlaneseq
      %v1824 = vshrl.u32 %v1823, 7
      %v1825 = vsub.s32 %v1268, %v1824
      %v1826 = vrot.slane %v964, %v1825
      %v1827 = vsel %vm1273, %v1826, %v1822
      %vm1828 = vcmask 1041409
      %v1829 = vsel %vm1828, %v1590, %v1274
      %v1830 = vsel %vm1828, %v1669, %v1353
      %v1831 = vsel %vm1828, %v1748, %v1432
      %v1832 = vsel %vm1828, %v1827, %v1511
      %1837 = vmatprep.subr.mxu0 0.0
      %1838 = vmatpush1.msra.mxu0 %v980
      %1839 = vmatprep.subr.mxu0 0.0
      %1840 = vmatpush1.msra.mxu0 %v979
      %1841 = vmatprep.subr.mxu0 0.0
      %1842 = vmatpush1.msra.mxu0 %v978
      %1843 = vmatprep.subr.mxu0 0.0
      %1844 = vmatpush1.msra.mxu0 %v977
      %1845 = vmatprep.subr.mxu0 0.0
      %1846 = vmatpush1.msra.mxu0 %v976
      %1847 = vmatprep.subr.mxu0 0.0
      %1848 = vmatpush1.msra.mxu0 %v975
      %1849 = vmatprep.subr.mxu0 0.0
      %1850 = vmatpush1.msra.mxu0 %v974
      %1851 = vmatprep.subr.mxu0 0.0
      %1852 = vmatpush1.msra.mxu0 %v973
      %1853 = vmatprep.subr.mxu0 0.0
      %1854 = vmatpush1.msra.mxu0 %v972
      %1855 = vmatprep.subr.mxu0 0.0
      %1856 = vmatpush1.msra.mxu0 %v971
      %1857 = vmatprep.subr.mxu0 0.0
      %1858 = vmatpush1.msra.mxu0 %v970
      %1859 = vmatprep.subr.mxu0 0.0
      %1860 = vmatpush1.msra.mxu0 %v969
      %1861 = vmatprep.subr.mxu0 0.0
      %1862 = vmatpush1.msra.mxu0 %v968
      %1863 = vmatprep.subr.mxu0 0.0
      %1864 = vmatpush1.msra.mxu0 %v967
      %1865 = vmatprep.subr.mxu0 0.0
      %1866 = vmatpush1.msra.mxu0 %v966
      %1867 = vmatprep.subr.mxu0 0.0
      %1868 = vmatpush1.msra.mxu0 %v965
      %1869 = vmatprep.subr.mxu0 0.0
      %1870 = vmatpush2.msra.mxu0 %v996
      %1871 = vmatprep.subr.mxu0 0.0
      %1872 = vmatpush2.msra.mxu0 %v995
      %1873 = vmatprep.subr.mxu0 0.0
      %1874 = vmatpush2.msra.mxu0 %v994
      %1875 = vmatprep.subr.mxu0 0.0
      %1876 = vmatpush2.msra.mxu0 %v993
      %1877 = vmatprep.subr.mxu0 0.0
      %1878 = vmatpush2.msra.mxu0 %v992
      %1879 = vmatprep.subr.mxu0 0.0
      %1880 = vmatpush2.msra.mxu0 %v991
      %1881 = vmatprep.subr.mxu0 0.0
      %1882 = vmatpush2.msra.mxu0 %v990
      %1883 = vmatprep.subr.mxu0 0.0
      %1884 = vmatpush2.msra.mxu0 %v989
      %1885 = vmatprep.subr.mxu0 0.0
      %1886 = vmatpush2.msra.mxu0 %v988
      %1887 = vmatprep.subr.mxu0 0.0
      %1888 = vmatpush2.msra.mxu0 %v987
      %1889 = vmatprep.subr.mxu0 0.0
      %1890 = vmatpush2.msra.mxu0 %v986
      %1891 = vmatprep.subr.mxu0 0.0
      %1892 = vmatpush2.msra.mxu0 %v985
      %1893 = vmatprep.subr.mxu0 0.0
      %1894 = vmatpush2.msra.mxu0 %v984
      %1895 = vmatprep.subr.mxu0 0.0
      %1896 = vmatpush2.msra.mxu0 %v983
      %1897 = vmatprep.subr.mxu0 0.0
      %1898 = vmatpush2.msra.mxu0 %v982
      %1899 = vmatprep.subr.mxu0 0.0
      %1900 = vmatpush2.msra.mxu0 %v981
      %1901 = vmatprep.mubr.f32.mxu0 %v1830
      %1902 = vmatmul.mubr.f32.gmra.mxu0 %v1829
      %v1903 = vpop.f32.mrf.mxu0
      %v1904 = vadd.f32 %v1034, %v1903
      %v1905 = vpop.f32.mrf.mxu0
      %1906 = vdwg.mxu0
      %1907 = vmatprep.subr.mxu0 0.0
      %1908 = vmatpush1.msra.mxu0 %v1012
      %1909 = vmatprep.subr.mxu0 0.0
      %1910 = vmatpush1.msra.mxu0 %v1011
      %1911 = vmatprep.subr.mxu0 0.0
      %1912 = vmatpush1.msra.mxu0 %v1010
      %1913 = vmatprep.subr.mxu0 0.0
      %1914 = vmatpush1.msra.mxu0 %v1009
      %1915 = vmatprep.subr.mxu0 0.0
      %1916 = vmatpush1.msra.mxu0 %v1008
      %1917 = vmatprep.subr.mxu0 0.0
      %1918 = vmatpush1.msra.mxu0 %v1007
      %1919 = vmatprep.subr.mxu0 0.0
      %1920 = vmatpush1.msra.mxu0 %v1006
      %1921 = vmatprep.subr.mxu0 0.0
      %1922 = vmatpush1.msra.mxu0 %v1005
      %1923 = vmatprep.subr.mxu0 0.0
      %1924 = vmatpush1.msra.mxu0 %v1004
      %1925 = vmatprep.subr.mxu0 0.0
      %1926 = vmatpush1.msra.mxu0 %v1003
      %1927 = vmatprep.subr.mxu0 0.0
      %1928 = vmatpush1.msra.mxu0 %v1002
      %1929 = vmatprep.subr.mxu0 0.0
      %1930 = vmatpush1.msra.mxu0 %v1001
      %1931 = vmatprep.subr.mxu0 0.0
      %1932 = vmatpush1.msra.mxu0 %v1000
      %1933 = vmatprep.subr.mxu0 0.0
      %1934 = vmatpush1.msra.mxu0 %v999
      %1935 = vmatprep.subr.mxu0 0.0
      %1936 = vmatpush1.msra.mxu0 %v998
      %1937 = vmatprep.subr.mxu0 0.0
      %1938 = vmatpush1.msra.mxu0 %v997
      %1939 = vmatprep.subr.mxu0 0.0
      %1940 = vmatpush2.msra.mxu0 %v1028
      %1941 = vmatprep.subr.mxu0 0.0
      %1942 = vmatpush2.msra.mxu0 %v1027
      %1943 = vmatprep.subr.mxu0 0.0
      %1944 = vmatpush2.msra.mxu0 %v1026
      %1945 = vmatprep.subr.mxu0 0.0
      %1946 = vmatpush2.msra.mxu0 %v1025
      %1947 = vmatprep.subr.mxu0 0.0
      %1948 = vmatpush2.msra.mxu0 %v1024
      %1949 = vmatprep.subr.mxu0 0.0
      %1950 = vmatpush2.msra.mxu0 %v1023
      %1951 = vmatprep.subr.mxu0 0.0
      %1952 = vmatpush2.msra.mxu0 %v1022
      %1953 = vmatprep.subr.mxu0 0.0
      %1954 = vmatpush2.msra.mxu0 %v1021
      %1955 = vmatprep.subr.mxu0 0.0
      %1956 = vmatpush2.msra.mxu0 %v1020
      %1957 = vmatprep.subr.mxu0 0.0
      %1958 = vmatpush2.msra.mxu0 %v1019
      %1959 = vmatprep.subr.mxu0 0.0
      %1960 = vmatpush2.msra.mxu0 %v1018
      %1961 = vmatprep.subr.mxu0 0.0
      %1962 = vmatpush2.msra.mxu0 %v1017
      %1963 = vmatprep.subr.mxu0 0.0
      %1964 = vmatpush2.msra.mxu0 %v1016
      %1965 = vmatprep.subr.mxu0 0.0
      %1966 = vmatpush2.msra.mxu0 %v1015
      %1967 = vmatprep.subr.mxu0 0.0
      %1968 = vmatpush2.msra.mxu0 %v1014
      %1969 = vmatprep.subr.mxu0 0.0
      %1970 = vmatpush2.msra.mxu0 %v1013
      %1971 = vmatprep.mubr.f32.mxu0 %v1832
      %1972 = vmatmul.mubr.f32.gmra.mxu0 %v1831
      %v1973 = vpop.f32.mrf.mxu0
      %v1974 = vadd.f32 %v1904, %v1973
      %v1975 = vpop.f32.mrf.mxu0
      %1976 = vdwg.mxu0
      %v1977 = vmax.f32 %v1974, 0.0
      %v1978 = vld [vmem:[%s4] sm:$0xff]
      %v1979 = vld [vmem:[%s4 + $0x8] sm:$0xff]
      %v1980 = vld [vmem:[%s4 + $0x10] sm:$0xff]
      %v1981 = vld [vmem:[%s4 + $0x18] sm:$0xff]
      %v1982 = vld [vmem:[%s4 + $0x20] sm:$0xff]
      %v1983 = vld [vmem:[%s4 + $0x28] sm:$0xff]
      %v1984 = vld [vmem:[%s4 + $0x30] sm:$0xff]
      %v1985 = vld [vmem:[%s4 + $0x38] sm:$0xff]
      %v1986 = vld [vmem:[%s4 + $0x40] sm:$0xff]
      %v1987 = vld [vmem:[%s4 + $0x48] sm:$0xff]
      %v1988 = vld [vmem:[%s4 + $0x50] sm:$0xff]
      %v1989 = vld [vmem:[%s4 + $0x58] sm:$0xff]
      %v1990 = vld [vmem:[%s4 + $0x60] sm:$0xff]
      %v1991 = vld [vmem:[%s4 + $0x68] sm:$0xff]
      %v1992 = vld [vmem:[%s4 + $0x70] sm:$0xff]
      %v1993 = vld [vmem:[%s4 + $0x78] sm:$0xff]
      %v1994 = vld [vmem:[%s4 + $0x80] sm:$0xff]
      %v1995 = vld [vmem:[%s4 + $0x88] sm:$0xff]
      %v1996 = vld [vmem:[%s4 + $0x90] sm:$0xff]
      %v1997 = vld [vmem:[%s4 + $0x98] sm:$0xff]
      %v1998 = vld [vmem:[%s4 + $0xa0] sm:$0xff]
      %v1999 = vld [vmem:[%s4 + $0xa8] sm:$0xff]
      %v2000 = vld [vmem:[%s4 + $0xb0] sm:$0xff]
      %v2001 = vld [vmem:[%s4 + $0xb8] sm:$0xff]
      %v2002 = vld [vmem:[%s4 + $0xc0] sm:$0xff]
      %v2003 = vld [vmem:[%s4 + $0xc8] sm:$0xff]
      %v2004 = vld [vmem:[%s4 + $0xd0] sm:$0xff]
      %v2005 = vld [vmem:[%s4 + $0xd8] sm:$0xff]
      %v2006 = vld [vmem:[%s4 + $0xe0] sm:$0xff]
      %v2007 = vld [vmem:[%s4 + $0xe8] sm:$0xff]
      %v2008 = vld [vmem:[%s4 + $0xf0] sm:$0xff]
      %v2009 = vld [vmem:[%s4 + $0xf8] sm:$0xff]
      %v2010 = vld [vmem:[%s4 + $0x100] sm:$0xff]
      %v2011 = vld [vmem:[%s4 + $0x108] sm:$0xff]
      %v2012 = vld [vmem:[%s4 + $0x110] sm:$0xff]
      %v2013 = vld [vmem:[%s4 + $0x118] sm:$0xff]
      %v2014 = vld [vmem:[%s4 + $0x120] sm:$0xff]
      %v2015 = vld [vmem:[%s4 + $0x128] sm:$0xff]
      %v2016 = vld [vmem:[%s4 + $0x130] sm:$0xff]
      %v2017 = vld [vmem:[%s4 + $0x138] sm:$0xff]
      %v2018 = vld [vmem:[%s4 + $0x140] sm:$0xff]
      %v2019 = vld [vmem:[%s4 + $0x148] sm:$0xff]
      %v2020 = vld [vmem:[%s4 + $0x150] sm:$0xff]
      %v2021 = vld [vmem:[%s4 + $0x158] sm:$0xff]
      %v2022 = vld [vmem:[%s4 + $0x160] sm:$0xff]
      %v2023 = vld [vmem:[%s4 + $0x168] sm:$0xff]
      %v2024 = vld [vmem:[%s4 + $0x170] sm:$0xff]
      %v2025 = vld [vmem:[%s4 + $0x178] sm:$0xff]
      %v2026 = vld [vmem:[%s4 + $0x180] sm:$0xff]
      %v2027 = vld [vmem:[%s4 + $0x188] sm:$0xff]
      %v2028 = vld [vmem:[%s4 + $0x190] sm:$0xff]
      %v2029 = vld [vmem:[%s4 + $0x198] sm:$0xff]
      %v2030 = vld [vmem:[%s4 + $0x1a0] sm:$0xff]
      %v2031 = vld [vmem:[%s4 + $0x1a8] sm:$0xff]
      %v2032 = vld [vmem:[%s4 + $0x1b0] sm:$0xff]
      %v2033 = vld [vmem:[%s4 + $0x1b8] sm:$0xff]
      %v2034 = vld [vmem:[%s4 + $0x1c0] sm:$0xff]
      %v2035 = vld [vmem:[%s4 + $0x1c8] sm:$0xff]
      %v2036 = vld [vmem:[%s4 + $0x1d0] sm:$0xff]
      %v2037 = vld [vmem:[%s4 + $0x1d8] sm:$0xff]
      %v2038 = vld [vmem:[%s4 + $0x1e0] sm:$0xff]
      %v2039 = vld [vmem:[%s4 + $0x1e8] sm:$0xff]
      %v2040 = vld [vmem:[%s4 + $0x1f0] sm:$0xff]
      %v2041 = vld [vmem:[%s4 + $0x1f8] sm:$0xff]
      %v2042 = vld [vmem:[%s5] sm:$0xf]
      %v2044 = vlaneseq
      %v2045 = vshrl.u32 %v2044, 7
      %v2046 = vsub.s32 0, %v2045
      %v2047 = vrot.slane %v2042, %v2046
      %v2048 = vlaneseq
      %v2049 = vshrl.u32 %v2048, 7
      %v2050 = vsub.s32 1, %v2049
      %v2051 = vrot.slane %v2042, %v2050
      %v2052 = vlaneseq
      %v2053 = vshrl.u32 %v2052, 7
      %v2054 = vsub.s32 2, %v2053
      %v2055 = vrot.slane %v2042, %v2054
      %v2056 = vlaneseq
      %v2057 = vshrl.u32 %v2056, 7
      %v2058 = vsub.s32 3, %v2057
      %v2059 = vrot.slane %v2042, %v2058
      %2064 = vmatprep.subr.mxu0 %v2039
      %2065 = vmatpush1.msra.mxu0 %v2038
      %2066 = vmatprep.subr.mxu0 %v2035
      %2067 = vmatpush1.msra.mxu0 %v2034
      %2068 = vmatprep.subr.mxu0 %v2031
      %2069 = vmatpush1.msra.mxu0 %v2030
      %2070 = vmatprep.subr.mxu0 %v2027
      %2071 = vmatpush1.msra.mxu0 %v2026
      %2072 = vmatprep.subr.mxu0 %v2023
      %2073 = vmatpush1.msra.mxu0 %v2022
      %2074 = vmatprep.subr.mxu0 %v2019
      %2075 = vmatpush1.msra.mxu0 %v2018
      %2076 = vmatprep.subr.mxu0 %v2015
      %2077 = vmatpush1.msra.mxu0 %v2014
      %2078 = vmatprep.subr.mxu0 %v2011
      %2079 = vmatpush1.msra.mxu0 %v2010
      %2080 = vmatprep.subr.mxu0 %v2007
      %2081 = vmatpush1.msra.mxu0 %v2006
      %2082 = vmatprep.subr.mxu0 %v2003
      %2083 = vmatpush1.msra.mxu0 %v2002
      %2084 = vmatprep.subr.mxu0 %v1999
      %2085 = vmatpush1.msra.mxu0 %v1998
      %2086 = vmatprep.subr.mxu0 %v1995
      %2087 = vmatpush1.msra.mxu0 %v1994
      %2088 = vmatprep.subr.mxu0 %v1991
      %2089 = vmatpush1.msra.mxu0 %v1990
      %2090 = vmatprep.subr.mxu0 %v1987
      %2091 = vmatpush1.msra.mxu0 %v1986
      %2092 = vmatprep.subr.mxu0 %v1983
      %2093 = vmatpush1.msra.mxu0 %v1982
      %2094 = vmatprep.subr.mxu0 %v1979
      %2095 = vmatpush1.msra.mxu0 %v1978
      %2096 = vmatprep.subr.mxu0 0.0
      %2097 = vmatpush2.msra.mxu0 0.0
      %2098 = vmatprep.subr.mxu0 0.0
      %2099 = vmatpush2.msra.mxu0 0.0
      %2100 = vmatprep.subr.mxu0 0.0
      %2101 = vmatpush2.msra.mxu0 0.0
      %2102 = vmatprep.subr.mxu0 0.0
      %2103 = vmatpush2.msra.mxu0 0.0
      %2104 = vmatprep.subr.mxu0 0.0
      %2105 = vmatpush2.msra.mxu0 0.0
      %2106 = vmatprep.subr.mxu0 0.0
      %2107 = vmatpush2.msra.mxu0 0.0
      %2108 = vmatprep.subr.mxu0 0.0
      %2109 = vmatpush2.msra.mxu0 0.0
      %2110 = vmatprep.subr.mxu0 0.0
      %2111 = vmatpush2.msra.mxu0 0.0
      %2112 = vmatprep.subr.mxu0 0.0
      %2113 = vmatpush2.msra.mxu0 0.0
      %2114 = vmatprep.subr.mxu0 0.0
      %2115 = vmatpush2.msra.mxu0 0.0
      %2116 = vmatprep.subr.mxu0 0.0
      %2117 = vmatpush2.msra.mxu0 0.0
      %2118 = vmatprep.subr.mxu0 0.0
      %2119 = vmatpush2.msra.mxu0 0.0
      %2120 = vmatprep.subr.mxu0 0.0
      %2121 = vmatpush2.msra.mxu0 0.0
      %2122 = vmatprep.subr.mxu0 0.0
      %2123 = vmatpush2.msra.mxu0 0.0
      %2124 = vmatprep.subr.mxu0 0.0
      %2125 = vmatpush2.msra.mxu0 0.0
      %2126 = vmatprep.subr.mxu0 0.0
      %2127 = vmatpush2.msra.mxu0 0.0
      %2128 = vmatprep.mubr.f32.mxu0 0.0
      %2129 = vmatmul.mubr.f32.gmra.mxu0 %v1977
      %v2130 = vpop.f32.mrf.mxu0
      %v2131 = vadd.f32 %v2047, %v2130
      %v2132 = vpop.f32.mrf.mxu0
      %v2133 = vadd.f32 %v2051, %v2132
      %2134 = vdwg.mxu0
      %2135 = vmatprep.subr.mxu0 %v2041
      %2136 = vmatpush1.msra.mxu0 %v2040
      %2137 = vmatprep.subr.mxu0 %v2037
      %2138 = vmatpush1.msra.mxu0 %v2036
      %2139 = vmatprep.subr.mxu0 %v2033
      %2140 = vmatpush1.msra.mxu0 %v2032
      %2141 = vmatprep.subr.mxu0 %v2029
      %2142 = vmatpush1.msra.mxu0 %v2028
      %2143 = vmatprep.subr.mxu0 %v2025
      %2144 = vmatpush1.msra.mxu0 %v2024
      %2145 = vmatprep.subr.mxu0 %v2021
      %2146 = vmatpush1.msra.mxu0 %v2020
      %2147 = vmatprep.subr.mxu0 %v2017
      %2148 = vmatpush1.msra.mxu0 %v2016
      %2149 = vmatprep.subr.mxu0 %v2013
      %2150 = vmatpush1.msra.mxu0 %v2012
      %2151 = vmatprep.subr.mxu0 %v2009
      %2152 = vmatpush1.msra.mxu0 %v2008
      %2153 = vmatprep.subr.mxu0 %v2005
      %2154 = vmatpush1.msra.mxu0 %v2004
      %2155 = vmatprep.subr.mxu0 %v2001
      %2156 = vmatpush1.msra.mxu0 %v2000
      %2157 = vmatprep.subr.mxu0 %v1997
      %2158 = vmatpush1.msra.mxu0 %v1996
      %2159 = vmatprep.subr.mxu0 %v1993
      %2160 = vmatpush1.msra.mxu0 %v1992
      %2161 = vmatprep.subr.mxu0 %v1989
      %2162 = vmatpush1.msra.mxu0 %v1988
      %2163 = vmatprep.subr.mxu0 %v1985
      %2164 = vmatpush1.msra.mxu0 %v1984
      %2165 = vmatprep.subr.mxu0 %v1981
      %2166 = vmatpush1.msra.mxu0 %v1980
      %2167 = vmatprep.subr.mxu0 0.0
      %2168 = vmatpush2.msra.mxu0 0.0
      %2169 = vmatprep.subr.mxu0 0.0
      %2170 = vmatpush2.msra.mxu0 0.0
      %2171 = vmatprep.subr.mxu0 0.0
      %2172 = vmatpush2.msra.mxu0 0.0
      %2173 = vmatprep.subr.mxu0 0.0
      %2174 = vmatpush2.msra.mxu0 0.0
      %2175 = vmatprep.subr.mxu0 0.0
      %2176 = vmatpush2.msra.mxu0 0.0
      %2177 = vmatprep.subr.mxu0 0.0
      %2178 = vmatpush2.msra.mxu0 0.0
      %2179 = vmatprep.subr.mxu0 0.0
      %2180 = vmatpush2.msra.mxu0 0.0
      %2181 = vmatprep.subr.mxu0 0.0
      %2182 = vmatpush2.msra.mxu0 0.0
      %2183 = vmatprep.subr.mxu0 0.0
      %2184 = vmatpush2.msra.mxu0 0.0
      %2185 = vmatprep.subr.mxu0 0.0
      %2186 = vmatpush2.msra.mxu0 0.0
      %2187 = vmatprep.subr.mxu0 0.0
      %2188 = vmatpush2.msra.mxu0 0.0
      %2189 = vmatprep.subr.mxu0 0.0
      %2190 = vmatpush2.msra.mxu0 0.0
      %2191 = vmatprep.subr.mxu0 0.0
      %2192 = vmatpush2.msra.mxu0 0.0
      %2193 = vmatprep.subr.mxu0 0.0
      %2194 = vmatpush2.msra.mxu0 0.0
      %2195 = vmatprep.subr.mxu0 0.0
      %2196 = vmatpush2.msra.mxu0 0.0
      %2197 = vmatprep.subr.mxu0 0.0
      %2198 = vmatpush2.msra.mxu0 0.0
      %2199 = vmatprep.mubr.f32.mxu0 0.0
      %2200 = vmatmul.mubr.f32.gmra.mxu0 %v1977
      %v2201 = vpop.f32.mrf.mxu0
      %v2202 = vadd.f32 %v2055, %v2201
      %v2203 = vpop.f32.mrf.mxu0
      %v2204 = vadd.f32 %v2059, %v2203
      %2205 = vdwg.mxu0
      %v2206 = vsub.f32 0.0, %v2131
      %v2207 = vsub.f32 0.0, %v2133
      %v2208 = vsub.f32 0.0, %v2202
      %v2209 = vsub.f32 0.0, %v2204
      %v2210 = vmul.f32 %v2206, 1.442695
      %v2211 = vpow.pop %v2210
      %v2212 = vmul.f32 %v2207, 1.442695
      %v2213 = vpow.pop %v2212
      %v2214 = vmul.f32 %v2208, 1.442695
      %v2215 = vpow.pop %v2214
      %v2216 = vmul.f32 %v2209, 1.442695
      %v2217 = vpow.pop %v2216
      %v2218 = vadd.f32 %v2211, 1.0
      %v2219 = vadd.f32 %v2213, 1.0
      %v2220 = vadd.f32 %v2215, 1.0
      %v2221 = vadd.f32 %v2217, 1.0
      %v2222 = vrcp.pop %v2218
      %v2223 = vrcp.pop %v2219
      %v2224 = vrcp.pop %v2220
      %v2225 = vrcp.pop %v2221
      %v2226 = vlaneseq
      %v2227 = vshrl.u32 %v2226, 7
      %v2228 = vsub.s32 0, %v2227
      %v2229 = vrot.slane %v2222, %v2228
      %2231 = vbcast.lane.b32.xlu0 %v2229, 256
      %v2232 = vpop.permute.xlu0 %2231
      %s2234 = sor.u32 256, 8
      %2235 = vbcast.lane.b32.xlu0 %v2229, %s2234
      %v2236 = vpop.permute.xlu0 %2235
      %s2238 = sor.u32 256, 16
      %2239 = vbcast.lane.b32.xlu0 %v2229, %s2238
      %v2240 = vpop.permute.xlu0 %2239
      %s2242 = sor.u32 256, 24
      %2243 = vbcast.lane.b32.xlu0 %v2229, %s2242
      %v2244 = vpop.permute.xlu0 %2243
      %s2246 = sor.u32 256, 32
      %2247 = vbcast.lane.b32.xlu0 %v2229, %s2246
      %v2248 = vpop.permute.xlu0 %2247
      %s2250 = sor.u32 256, 40
      %2251 = vbcast.lane.b32.xlu0 %v2229, %s2250
      %v2252 = vpop.permute.xlu0 %2251
      %s2254 = sor.u32 256, 48
      %2255 = vbcast.lane.b32.xlu0 %v2229, %s2254
      %v2256 = vpop.permute.xlu0 %2255
      %s2258 = sor.u32 256, 56
      %2259 = vbcast.lane.b32.xlu0 %v2229, %s2258
      %v2260 = vpop.permute.xlu0 %2259
      %s2262 = sor.u32 256, 64
      %2263 = vbcast.lane.b32.xlu0 %v2229, %s2262
      %v2264 = vpop.permute.xlu0 %2263
      %s2266 = sor.u32 256, 72
      %2267 = vbcast.lane.b32.xlu0 %v2229, %s2266
      %v2268 = vpop.permute.xlu0 %2267
      %s2270 = sor.u32 256, 80
      %2271 = vbcast.lane.b32.xlu0 %v2229, %s2270
      %v2272 = vpop.permute.xlu0 %2271
      %s2274 = sor.u32 256, 88
      %2275 = vbcast.lane.b32.xlu0 %v2229, %s2274
      %v2276 = vpop.permute.xlu0 %2275
      %s2278 = sor.u32 256, 96
      %2279 = vbcast.lane.b32.xlu0 %v2229, %s2278
      %v2280 = vpop.permute.xlu0 %2279
      %s2282 = sor.u32 256, 104
      %2283 = vbcast.lane.b32.xlu0 %v2229, %s2282
      %v2284 = vpop.permute.xlu0 %2283
      %s2286 = sor.u32 256, 112
      %2287 = vbcast.lane.b32.xlu0 %v2229, %s2286
      %v2288 = vpop.permute.xlu0 %2287
      %s2290 = sor.u32 256, 120
      %2291 = vbcast.lane.b32.xlu0 %v2229, %s2290
      %v2292 = vpop.permute.xlu0 %2291
      %v2293 = vlaneseq
      %v2294 = vshrl.u32 %v2293, 7
      %v2295 = vsub.s32 0, %v2294
      %v2296 = vrot.slane %v2223, %v2295
      %2298 = vbcast.lane.b32.xlu0 %v2296, 256
      %v2299 = vpop.permute.xlu0 %2298
      %s2301 = sor.u32 256, 8
      %2302 = vbcast.lane.b32.xlu0 %v2296, %s2301
      %v2303 = vpop.permute.xlu0 %2302
      %s2305 = sor.u32 256, 16
      %2306 = vbcast.lane.b32.xlu0 %v2296, %s2305
      %v2307 = vpop.permute.xlu0 %2306
      %s2309 = sor.u32 256, 24
      %2310 = vbcast.lane.b32.xlu0 %v2296, %s2309
      %v2311 = vpop.permute.xlu0 %2310
      %s2313 = sor.u32 256, 32
      %2314 = vbcast.lane.b32.xlu0 %v2296, %s2313
      %v2315 = vpop.permute.xlu0 %2314
      %s2317 = sor.u32 256, 40
      %2318 = vbcast.lane.b32.xlu0 %v2296, %s2317
      %v2319 = vpop.permute.xlu0 %2318
      %s2321 = sor.u32 256, 48
      %2322 = vbcast.lane.b32.xlu0 %v2296, %s2321
      %v2323 = vpop.permute.xlu0 %2322
      %s2325 = sor.u32 256, 56
      %2326 = vbcast.lane.b32.xlu0 %v2296, %s2325
      %v2327 = vpop.permute.xlu0 %2326
      %s2329 = sor.u32 256, 64
      %2330 = vbcast.lane.b32.xlu0 %v2296, %s2329
      %v2331 = vpop.permute.xlu0 %2330
      %s2333 = sor.u32 256, 72
      %2334 = vbcast.lane.b32.xlu0 %v2296, %s2333
      %v2335 = vpop.permute.xlu0 %2334
      %s2337 = sor.u32 256, 80
      %2338 = vbcast.lane.b32.xlu0 %v2296, %s2337
      %v2339 = vpop.permute.xlu0 %2338
      %s2341 = sor.u32 256, 88
      %2342 = vbcast.lane.b32.xlu0 %v2296, %s2341
      %v2343 = vpop.permute.xlu0 %2342
      %s2345 = sor.u32 256, 96
      %2346 = vbcast.lane.b32.xlu0 %v2296, %s2345
      %v2347 = vpop.permute.xlu0 %2346
      %s2349 = sor.u32 256, 104
      %2350 = vbcast.lane.b32.xlu0 %v2296, %s2349
      %v2351 = vpop.permute.xlu0 %2350
      %s2353 = sor.u32 256, 112
      %2354 = vbcast.lane.b32.xlu0 %v2296, %s2353
      %v2355 = vpop.permute.xlu0 %2354
      %s2357 = sor.u32 256, 120
      %2358 = vbcast.lane.b32.xlu0 %v2296, %s2357
      %v2359 = vpop.permute.xlu0 %2358
      %v2360 = vlaneseq
      %v2361 = vshrl.u32 %v2360, 7
      %v2362 = vsub.s32 0, %v2361
      %v2363 = vrot.slane %v2224, %v2362
      %2365 = vbcast.lane.b32.xlu0 %v2363, 256
      %v2366 = vpop.permute.xlu0 %2365
      %s2368 = sor.u32 256, 8
      %2369 = vbcast.lane.b32.xlu0 %v2363, %s2368
      %v2370 = vpop.permute.xlu0 %2369
      %s2372 = sor.u32 256, 16
      %2373 = vbcast.lane.b32.xlu0 %v2363, %s2372
      %v2374 = vpop.permute.xlu0 %2373
      %s2376 = sor.u32 256, 24
      %2377 = vbcast.lane.b32.xlu0 %v2363, %s2376
      %v2378 = vpop.permute.xlu0 %2377
      %s2380 = sor.u32 256, 32
      %2381 = vbcast.lane.b32.xlu0 %v2363, %s2380
      %v2382 = vpop.permute.xlu0 %2381
      %s2384 = sor.u32 256, 40
      %2385 = vbcast.lane.b32.xlu0 %v2363, %s2384
      %v2386 = vpop.permute.xlu0 %2385
      %s2388 = sor.u32 256, 48
      %2389 = vbcast.lane.b32.xlu0 %v2363, %s2388
      %v2390 = vpop.permute.xlu0 %2389
      %s2392 = sor.u32 256, 56
      %2393 = vbcast.lane.b32.xlu0 %v2363, %s2392
      %v2394 = vpop.permute.xlu0 %2393
      %s2396 = sor.u32 256, 64
      %2397 = vbcast.lane.b32.xlu0 %v2363, %s2396
      %v2398 = vpop.permute.xlu0 %2397
      %s2400 = sor.u32 256, 72
      %2401 = vbcast.lane.b32.xlu0 %v2363, %s2400
      %v2402 = vpop.permute.xlu0 %2401
      %s2404 = sor.u32 256, 80
      %2405 = vbcast.lane.b32.xlu0 %v2363, %s2404
      %v2406 = vpop.permute.xlu0 %2405
      %s2408 = sor.u32 256, 88
      %2409 = vbcast.lane.b32.xlu0 %v2363, %s2408
      %v2410 = vpop.permute.xlu0 %2409
      %s2412 = sor.u32 256, 96
      %2413 = vbcast.lane.b32.xlu0 %v2363, %s2412
      %v2414 = vpop.permute.xlu0 %2413
      %s2416 = sor.u32 256, 104
      %2417 = vbcast.lane.b32.xlu0 %v2363, %s2416
      %v2418 = vpop.permute.xlu0 %2417
      %s2420 = sor.u32 256, 112
      %2421 = vbcast.lane.b32.xlu0 %v2363, %s2420
      %v2422 = vpop.permute.xlu0 %2421
      %s2424 = sor.u32 256, 120
      %2425 = vbcast.lane.b32.xlu0 %v2363, %s2424
      %v2426 = vpop.permute.xlu0 %2425
      %v2427 = vlaneseq
      %v2428 = vshrl.u32 %v2427, 7
      %v2429 = vsub.s32 0, %v2428
      %v2430 = vrot.slane %v2225, %v2429
      %2432 = vbcast.lane.b32.xlu0 %v2430, 256
      %v2433 = vpop.permute.xlu0 %2432
      %s2435 = sor.u32 256, 8
      %2436 = vbcast.lane.b32.xlu0 %v2430, %s2435
      %v2437 = vpop.permute.xlu0 %2436
      %s2439 = sor.u32 256, 16
      %2440 = vbcast.lane.b32.xlu0 %v2430, %s2439
      %v2441 = vpop.permute.xlu0 %2440
      %s2443 = sor.u32 256, 24
      %2444 = vbcast.lane.b32.xlu0 %v2430, %s2443
      %v2445 = vpop.permute.xlu0 %2444
      %s2447 = sor.u32 256, 32
      %2448 = vbcast.lane.b32.xlu0 %v2430, %s2447
      %v2449 = vpop.permute.xlu0 %2448
      %s2451 = sor.u32 256, 40
      %2452 = vbcast.lane.b32.xlu0 %v2430, %s2451
      %v2453 = vpop.permute.xlu0 %2452
      %s2455 = sor.u32 256, 48
      %2456 = vbcast.lane.b32.xlu0 %v2430, %s2455
      %v2457 = vpop.permute.xlu0 %2456
      %s2459 = sor.u32 256, 56
      %2460 = vbcast.lane.b32.xlu0 %v2430, %s2459
      %v2461 = vpop.permute.xlu0 %2460
      %s2463 = sor.u32 256, 64
      %2464 = vbcast.lane.b32.xlu0 %v2430, %s2463
      %v2465 = vpop.permute.xlu0 %2464
      %s2467 = sor.u32 256, 72
      %2468 = vbcast.lane.b32.xlu0 %v2430, %s2467
      %v2469 = vpop.permute.xlu0 %2468
      %s2471 = sor.u32 256, 80
      %2472 = vbcast.lane.b32.xlu0 %v2430, %s2471
      %v2473 = vpop.permute.xlu0 %2472
      %s2475 = sor.u32 256, 88
      %2476 = vbcast.lane.b32.xlu0 %v2430, %s2475
      %v2477 = vpop.permute.xlu0 %2476
      %s2479 = sor.u32 256, 96
      %2480 = vbcast.lane.b32.xlu0 %v2430, %s2479
      %v2481 = vpop.permute.xlu0 %2480
      %s2483 = sor.u32 256, 104
      %2484 = vbcast.lane.b32.xlu0 %v2430, %s2483
      %v2485 = vpop.permute.xlu0 %2484
      %s2487 = sor.u32 256, 112
      %2488 = vbcast.lane.b32.xlu0 %v2430, %s2487
      %v2489 = vpop.permute.xlu0 %2488
      %s2491 = sor.u32 256, 120
      %2492 = vbcast.lane.b32.xlu0 %v2430, %s2491
      %v2493 = vpop.permute.xlu0 %2492
      %v2494 = vlaneseq
      %v2495 = vshrl.u32 %v2494, 7
      %v2496 = vsub.s32 1, %v2495
      %v2497 = vrot.slane %v2222, %v2496
      %2499 = vbcast.lane.b32.xlu0 %v2497, 256
      %v2500 = vpop.permute.xlu0 %2499
      %s2502 = sor.u32 256, 8
      %2503 = vbcast.lane.b32.xlu0 %v2497, %s2502
      %v2504 = vpop.permute.xlu0 %2503
      %s2506 = sor.u32 256, 16
      %2507 = vbcast.lane.b32.xlu0 %v2497, %s2506
      %v2508 = vpop.permute.xlu0 %2507
      %s2510 = sor.u32 256, 24
      %2511 = vbcast.lane.b32.xlu0 %v2497, %s2510
      %v2512 = vpop.permute.xlu0 %2511
      %s2514 = sor.u32 256, 32
      %2515 = vbcast.lane.b32.xlu0 %v2497, %s2514
      %v2516 = vpop.permute.xlu0 %2515
      %s2518 = sor.u32 256, 40
      %2519 = vbcast.lane.b32.xlu0 %v2497, %s2518
      %v2520 = vpop.permute.xlu0 %2519
      %s2522 = sor.u32 256, 48
      %2523 = vbcast.lane.b32.xlu0 %v2497, %s2522
      %v2524 = vpop.permute.xlu0 %2523
      %s2526 = sor.u32 256, 56
      %2527 = vbcast.lane.b32.xlu0 %v2497, %s2526
      %v2528 = vpop.permute.xlu0 %2527
      %s2530 = sor.u32 256, 64
      %2531 = vbcast.lane.b32.xlu0 %v2497, %s2530
      %v2532 = vpop.permute.xlu0 %2531
      %s2534 = sor.u32 256, 72
      %2535 = vbcast.lane.b32.xlu0 %v2497, %s2534
      %v2536 = vpop.permute.xlu0 %2535
      %s2538 = sor.u32 256, 80
      %2539 = vbcast.lane.b32.xlu0 %v2497, %s2538
      %v2540 = vpop.permute.xlu0 %2539
      %s2542 = sor.u32 256, 88
      %2543 = vbcast.lane.b32.xlu0 %v2497, %s2542
      %v2544 = vpop.permute.xlu0 %2543
      %s2546 = sor.u32 256, 96
      %2547 = vbcast.lane.b32.xlu0 %v2497, %s2546
      %v2548 = vpop.permute.xlu0 %2547
      %s2550 = sor.u32 256, 104
      %2551 = vbcast.lane.b32.xlu0 %v2497, %s2550
      %v2552 = vpop.permute.xlu0 %2551
      %s2554 = sor.u32 256, 112
      %2555 = vbcast.lane.b32.xlu0 %v2497, %s2554
      %v2556 = vpop.permute.xlu0 %2555
      %s2558 = sor.u32 256, 120
      %2559 = vbcast.lane.b32.xlu0 %v2497, %s2558
      %v2560 = vpop.permute.xlu0 %2559
      %v2561 = vlaneseq
      %v2562 = vshrl.u32 %v2561, 7
      %v2563 = vsub.s32 1, %v2562
      %v2564 = vrot.slane %v2223, %v2563
      %2566 = vbcast.lane.b32.xlu0 %v2564, 256
      %v2567 = vpop.permute.xlu0 %2566
      %s2569 = sor.u32 256, 8
      %2570 = vbcast.lane.b32.xlu0 %v2564, %s2569
      %v2571 = vpop.permute.xlu0 %2570
      %s2573 = sor.u32 256, 16
      %2574 = vbcast.lane.b32.xlu0 %v2564, %s2573
      %v2575 = vpop.permute.xlu0 %2574
      %s2577 = sor.u32 256, 24
      %2578 = vbcast.lane.b32.xlu0 %v2564, %s2577
      %v2579 = vpop.permute.xlu0 %2578
      %s2581 = sor.u32 256, 32
      %2582 = vbcast.lane.b32.xlu0 %v2564, %s2581
      %v2583 = vpop.permute.xlu0 %2582
      %s2585 = sor.u32 256, 40
      %2586 = vbcast.lane.b32.xlu0 %v2564, %s2585
      %v2587 = vpop.permute.xlu0 %2586
      %s2589 = sor.u32 256, 48
      %2590 = vbcast.lane.b32.xlu0 %v2564, %s2589
      %v2591 = vpop.permute.xlu0 %2590
      %s2593 = sor.u32 256, 56
      %2594 = vbcast.lane.b32.xlu0 %v2564, %s2593
      %v2595 = vpop.permute.xlu0 %2594
      %s2597 = sor.u32 256, 64
      %2598 = vbcast.lane.b32.xlu0 %v2564, %s2597
      %v2599 = vpop.permute.xlu0 %2598
      %s2601 = sor.u32 256, 72
      %2602 = vbcast.lane.b32.xlu0 %v2564, %s2601
      %v2603 = vpop.permute.xlu0 %2602
      %s2605 = sor.u32 256, 80
      %2606 = vbcast.lane.b32.xlu0 %v2564, %s2605
      %v2607 = vpop.permute.xlu0 %2606
      %s2609 = sor.u32 256, 88
      %2610 = vbcast.lane.b32.xlu0 %v2564, %s2609
      %v2611 = vpop.permute.xlu0 %2610
      %s2613 = sor.u32 256, 96
      %2614 = vbcast.lane.b32.xlu0 %v2564, %s2613
      %v2615 = vpop.permute.xlu0 %2614
      %s2617 = sor.u32 256, 104
      %2618 = vbcast.lane.b32.xlu0 %v2564, %s2617
      %v2619 = vpop.permute.xlu0 %2618
      %s2621 = sor.u32 256, 112
      %2622 = vbcast.lane.b32.xlu0 %v2564, %s2621
      %v2623 = vpop.permute.xlu0 %2622
      %s2625 = sor.u32 256, 120
      %2626 = vbcast.lane.b32.xlu0 %v2564, %s2625
      %v2627 = vpop.permute.xlu0 %2626
      %v2628 = vlaneseq
      %v2629 = vshrl.u32 %v2628, 7
      %v2630 = vsub.s32 1, %v2629
      %v2631 = vrot.slane %v2224, %v2630
      %2633 = vbcast.lane.b32.xlu0 %v2631, 256
      %v2634 = vpop.permute.xlu0 %2633
      %s2636 = sor.u32 256, 8
      %2637 = vbcast.lane.b32.xlu0 %v2631, %s2636
      %v2638 = vpop.permute.xlu0 %2637
      %s2640 = sor.u32 256, 16
      %2641 = vbcast.lane.b32.xlu0 %v2631, %s2640
      %v2642 = vpop.permute.xlu0 %2641
      %s2644 = sor.u32 256, 24
      %2645 = vbcast.lane.b32.xlu0 %v2631, %s2644
      %v2646 = vpop.permute.xlu0 %2645
      %s2648 = sor.u32 256, 32
      %2649 = vbcast.lane.b32.xlu0 %v2631, %s2648
      %v2650 = vpop.permute.xlu0 %2649
      %s2652 = sor.u32 256, 40
      %2653 = vbcast.lane.b32.xlu0 %v2631, %s2652
      %v2654 = vpop.permute.xlu0 %2653
      %s2656 = sor.u32 256, 48
      %2657 = vbcast.lane.b32.xlu0 %v2631, %s2656
      %v2658 = vpop.permute.xlu0 %2657
      %s2660 = sor.u32 256, 56
      %2661 = vbcast.lane.b32.xlu0 %v2631, %s2660
      %v2662 = vpop.permute.xlu0 %2661
      %s2664 = sor.u32 256, 64
      %2665 = vbcast.lane.b32.xlu0 %v2631, %s2664
      %v2666 = vpop.permute.xlu0 %2665
      %s2668 = sor.u32 256, 72
      %2669 = vbcast.lane.b32.xlu0 %v2631, %s2668
      %v2670 = vpop.permute.xlu0 %2669
      %s2672 = sor.u32 256, 80
      %2673 = vbcast.lane.b32.xlu0 %v2631, %s2672
      %v2674 = vpop.permute.xlu0 %2673
      %s2676 = sor.u32 256, 88
      %2677 = vbcast.lane.b32.xlu0 %v2631, %s2676
      %v2678 = vpop.permute.xlu0 %2677
      %s2680 = sor.u32 256, 96
      %2681 = vbcast.lane.b32.xlu0 %v2631, %s2680
      %v2682 = vpop.permute.xlu0 %2681
      %s2684 = sor.u32 256, 104
      %2685 = vbcast.lane.b32.xlu0 %v2631, %s2684
      %v2686 = vpop.permute.xlu0 %2685
      %s2688 = sor.u32 256, 112
      %2689 = vbcast.lane.b32.xlu0 %v2631, %s2688
      %v2690 = vpop.permute.xlu0 %2689
      %s2692 = sor.u32 256, 120
      %2693 = vbcast.lane.b32.xlu0 %v2631, %s2692
      %v2694 = vpop.permute.xlu0 %2693
      %v2695 = vlaneseq
      %v2696 = vshrl.u32 %v2695, 7
      %v2697 = vsub.s32 1, %v2696
      %v2698 = vrot.slane %v2225, %v2697
      %2700 = vbcast.lane.b32.xlu0 %v2698, 256
      %v2701 = vpop.permute.xlu0 %2700
      %s2703 = sor.u32 256, 8
      %2704 = vbcast.lane.b32.xlu0 %v2698, %s2703
      %v2705 = vpop.permute.xlu0 %2704
      %s2707 = sor.u32 256, 16
      %2708 = vbcast.lane.b32.xlu0 %v2698, %s2707
      %v2709 = vpop.permute.xlu0 %2708
      %s2711 = sor.u32 256, 24
      %2712 = vbcast.lane.b32.xlu0 %v2698, %s2711
      %v2713 = vpop.permute.xlu0 %2712
      %s2715 = sor.u32 256, 32
      %2716 = vbcast.lane.b32.xlu0 %v2698, %s2715
      %v2717 = vpop.permute.xlu0 %2716
      %s2719 = sor.u32 256, 40
      %2720 = vbcast.lane.b32.xlu0 %v2698, %s2719
      %v2721 = vpop.permute.xlu0 %2720
      %s2723 = sor.u32 256, 48
      %2724 = vbcast.lane.b32.xlu0 %v2698, %s2723
      %v2725 = vpop.permute.xlu0 %2724
      %s2727 = sor.u32 256, 56
      %2728 = vbcast.lane.b32.xlu0 %v2698, %s2727
      %v2729 = vpop.permute.xlu0 %2728
      %s2731 = sor.u32 256, 64
      %2732 = vbcast.lane.b32.xlu0 %v2698, %s2731
      %v2733 = vpop.permute.xlu0 %2732
      %s2735 = sor.u32 256, 72
      %2736 = vbcast.lane.b32.xlu0 %v2698, %s2735
      %v2737 = vpop.permute.xlu0 %2736
      %s2739 = sor.u32 256, 80
      %2740 = vbcast.lane.b32.xlu0 %v2698, %s2739
      %v2741 = vpop.permute.xlu0 %2740
      %s2743 = sor.u32 256, 88
      %2744 = vbcast.lane.b32.xlu0 %v2698, %s2743
      %v2745 = vpop.permute.xlu0 %2744
      %s2747 = sor.u32 256, 96
      %2748 = vbcast.lane.b32.xlu0 %v2698, %s2747
      %v2749 = vpop.permute.xlu0 %2748
      %s2751 = sor.u32 256, 104
      %2752 = vbcast.lane.b32.xlu0 %v2698, %s2751
      %v2753 = vpop.permute.xlu0 %2752
      %s2755 = sor.u32 256, 112
      %2756 = vbcast.lane.b32.xlu0 %v2698, %s2755
      %v2757 = vpop.permute.xlu0 %2756
      %s2759 = sor.u32 256, 120
      %2760 = vbcast.lane.b32.xlu0 %v2698, %s2759
      %v2761 = vpop.permute.xlu0 %2760
      %v2762 = vmul.f32 %v260, %v2232
      %v2763 = vmul.f32 %v261, %v2236
      %v2764 = vmul.f32 %v262, %v2240
      %v2765 = vmul.f32 %v263, %v2244
      %v2766 = vmul.f32 %v264, %v2248
      %v2767 = vmul.f32 %v265, %v2252
      %v2768 = vmul.f32 %v266, %v2256
      %v2769 = vmul.f32 %v267, %v2260
      %v2770 = vmul.f32 %v268, %v2264
      %v2771 = vmul.f32 %v269, %v2268
      %v2772 = vmul.f32 %v270, %v2272
      %v2773 = vmul.f32 %v271, %v2276
      %v2774 = vmul.f32 %v272, %v2280
      %v2775 = vmul.f32 %v273, %v2284
      %v2776 = vmul.f32 %v274, %v2288
      %v2777 = vmul.f32 %v275, %v2292
      %v2778 = vmul.f32 %v276, %v2299
      %v2779 = vmul.f32 %v277, %v2303
      %v2780 = vmul.f32 %v278, %v2307
      %v2781 = vmul.f32 %v279, %v2311
      %v2782 = vmul.f32 %v280, %v2315
      %v2783 = vmul.f32 %v281, %v2319
      %v2784 = vmul.f32 %v282, %v2323
      %v2785 = vmul.f32 %v283, %v2327
      %v2786 = vmul.f32 %v284, %v2331
      %v2787 = vmul.f32 %v285, %v2335
      %v2788 = vmul.f32 %v286, %v2339
      %v2789 = vmul.f32 %v287, %v2343
      %v2790 = vmul.f32 %v288, %v2347
      %v2791 = vmul.f32 %v289, %v2351
      %v2792 = vmul.f32 %v290, %v2355
      %v2793 = vmul.f32 %v291, %v2359
      %v2794 = vmul.f32 %v292, %v2366
      %v2795 = vmul.f32 %v293, %v2370
      %v2796 = vmul.f32 %v294, %v2374
      %v2797 = vmul.f32 %v295, %v2378
      %v2798 = vmul.f32 %v296, %v2382
      %v2799 = vmul.f32 %v297, %v2386
      %v2800 = vmul.f32 %v298, %v2390
      %v2801 = vmul.f32 %v299, %v2394
      %v2802 = vmul.f32 %v300, %v2398
      %v2803 = vmul.f32 %v301, %v2402
      %v2804 = vmul.f32 %v302, %v2406
      %v2805 = vmul.f32 %v303, %v2410
      %v2806 = vmul.f32 %v304, %v2414
      %v2807 = vmul.f32 %v305, %v2418
      %v2808 = vmul.f32 %v306, %v2422
      %v2809 = vmul.f32 %v307, %v2426
      %v2810 = vmul.f32 %v308, %v2433
      %v2811 = vmul.f32 %v309, %v2437
      %v2812 = vmul.f32 %v310, %v2441
      %v2813 = vmul.f32 %v311, %v2445
      %v2814 = vmul.f32 %v312, %v2449
      %v2815 = vmul.f32 %v313, %v2453
      %v2816 = vmul.f32 %v314, %v2457
      %v2817 = vmul.f32 %v315, %v2461
      %v2818 = vmul.f32 %v316, %v2465
      %v2819 = vmul.f32 %v317, %v2469
      %v2820 = vmul.f32 %v318, %v2473
      %v2821 = vmul.f32 %v319, %v2477
      %v2822 = vmul.f32 %v320, %v2481
      %v2823 = vmul.f32 %v321, %v2485
      %v2824 = vmul.f32 %v322, %v2489
      %v2825 = vmul.f32 %v323, %v2493
      %v2826 = vmul.f32 %v324, %v2500
      %v2827 = vmul.f32 %v325, %v2504
      %v2828 = vmul.f32 %v326, %v2508
      %v2829 = vmul.f32 %v327, %v2512
      %v2830 = vmul.f32 %v328, %v2516
      %v2831 = vmul.f32 %v329, %v2520
      %v2832 = vmul.f32 %v330, %v2524
      %v2833 = vmul.f32 %v331, %v2528
      %v2834 = vmul.f32 %v332, %v2532
      %v2835 = vmul.f32 %v333, %v2536
      %v2836 = vmul.f32 %v334, %v2540
      %v2837 = vmul.f32 %v335, %v2544
      %v2838 = vmul.f32 %v336, %v2548
      %v2839 = vmul.f32 %v337, %v2552
      %v2840 = vmul.f32 %v338, %v2556
      %v2841 = vmul.f32 %v339, %v2560
      %v2842 = vmul.f32 %v340, %v2567
      %v2843 = vmul.f32 %v341, %v2571
      %v2844 = vmul.f32 %v342, %v2575
      %v2845 = vmul.f32 %v343, %v2579
      %v2846 = vmul.f32 %v344, %v2583
      %v2847 = vmul.f32 %v345, %v2587
      %v2848 = vmul.f32 %v346, %v2591
      %v2849 = vmul.f32 %v347, %v2595
      %v2850 = vmul.f32 %v348, %v2599
      %v2851 = vmul.f32 %v349, %v2603
      %v2852 = vmul.f32 %v350, %v2607
      %v2853 = vmul.f32 %v351, %v2611
      %v2854 = vmul.f32 %v352, %v2615
      %v2855 = vmul.f32 %v353, %v2619
      %v2856 = vmul.f32 %v354, %v2623
      %v2857 = vmul.f32 %v355, %v2627
      %v2858 = vmul.f32 %v356, %v2634
      %v2859 = vmul.f32 %v357, %v2638
      %v2860 = vmul.f32 %v358, %v2642
      %v2861 = vmul.f32 %v359, %v2646
      %v2862 = vmul.f32 %v360, %v2650
      %v2863 = vmul.f32 %v361, %v2654
      %v2864 = vmul.f32 %v362, %v2658
      %v2865 = vmul.f32 %v363, %v2662
      %v2866 = vmul.f32 %v364, %v2666
      %v2867 = vmul.f32 %v365, %v2670
      %v2868 = vmul.f32 %v366, %v2674
      %v2869 = vmul.f32 %v367, %v2678
      %v2870 = vmul.f32 %v368, %v2682
      %v2871 = vmul.f32 %v369, %v2686
      %v2872 = vmul.f32 %v370, %v2690
      %v2873 = vmul.f32 %v371, %v2694
      %v2874 = vmul.f32 %v372, %v2701
      %v2875 = vmul.f32 %v373, %v2705
      %v2876 = vmul.f32 %v374, %v2709
      %v2877 = vmul.f32 %v375, %v2713
      %v2878 = vmul.f32 %v376, %v2717
      %v2879 = vmul.f32 %v377, %v2721
      %v2880 = vmul.f32 %v378, %v2725
      %v2881 = vmul.f32 %v379, %v2729
      %v2882 = vmul.f32 %v380, %v2733
      %v2883 = vmul.f32 %v381, %v2737
      %v2884 = vmul.f32 %v382, %v2741
      %v2885 = vmul.f32 %v383, %v2745
      %v2886 = vmul.f32 %v384, %v2749
      %v2887 = vmul.f32 %v385, %v2753
      %v2888 = vmul.f32 %v386, %v2757
      %v2889 = vmul.f32 %v387, %v2761
      %2890 = vst.msk [vmem:[%s258] sm:$0xff] %vm580, %v2762
      %2891 = vst.msk [vmem:[%s258 + $0x8] sm:$0xff] %vm580, %v2763
      %2892 = vst.msk [vmem:[%s258 + $0x10] sm:$0xff] %vm580, %v2764
      %2893 = vst.msk [vmem:[%s258 + $0x18] sm:$0xff] %vm580, %v2765
      %2894 = vst.msk [vmem:[%s258 + $0x20] sm:$0xff] %vm580, %v2766
      %2895 = vst.msk [vmem:[%s258 + $0x28] sm:$0xff] %vm580, %v2767
      %2896 = vst.msk [vmem:[%s258 + $0x30] sm:$0xff] %vm580, %v2768
      %2897 = vst.msk [vmem:[%s258 + $0x38] sm:$0xff] %vm580, %v2769
      %2898 = vst.msk [vmem:[%s258 + $0x40] sm:$0xff] %vm580, %v2770
      %2899 = vst.msk [vmem:[%s258 + $0x48] sm:$0xff] %vm580, %v2771
      %2900 = vst.msk [vmem:[%s258 + $0x50] sm:$0xff] %vm580, %v2772
      %2901 = vst.msk [vmem:[%s258 + $0x58] sm:$0xff] %vm580, %v2773
      %2902 = vst.msk [vmem:[%s258 + $0x60] sm:$0xff] %vm580, %v2774
      %2903 = vst.msk [vmem:[%s258 + $0x68] sm:$0xff] %vm580, %v2775
      %2904 = vst.msk [vmem:[%s258 + $0x70] sm:$0xff] %vm580, %v2776
      %2905 = vst.msk [vmem:[%s258 + $0x78] sm:$0xff] %vm580, %v2777
      %2906 = vst.msk [vmem:[%s258 + $0x80] sm:$0xff] %vm580, %v2778
      %2907 = vst.msk [vmem:[%s258 + $0x88] sm:$0xff] %vm580, %v2779
      %2908 = vst.msk [vmem:[%s258 + $0x90] sm:$0xff] %vm580, %v2780
      %2909 = vst.msk [vmem:[%s258 + $0x98] sm:$0xff] %vm580, %v2781
      %2910 = vst.msk [vmem:[%s258 + $0xa0] sm:$0xff] %vm580, %v2782
      %2911 = vst.msk [vmem:[%s258 + $0xa8] sm:$0xff] %vm580, %v2783
      %2912 = vst.msk [vmem:[%s258 + $0xb0] sm:$0xff] %vm580, %v2784
      %2913 = vst.msk [vmem:[%s258 + $0xb8] sm:$0xff] %vm580, %v2785
      %2914 = vst.msk [vmem:[%s258 + $0xc0] sm:$0xff] %vm580, %v2786
      %2915 = vst.msk [vmem:[%s258 + $0xc8] sm:$0xff] %vm580, %v2787
      %2916 = vst.msk [vmem:[%s258 + $0xd0] sm:$0xff] %vm580, %v2788
      %2917 = vst.msk [vmem:[%s258 + $0xd8] sm:$0xff] %vm580, %v2789
      %2918 = vst.msk [vmem:[%s258 + $0xe0] sm:$0xff] %vm580, %v2790
      %2919 = vst.msk [vmem:[%s258 + $0xe8] sm:$0xff] %vm580, %v2791
      %2920 = vst.msk [vmem:[%s258 + $0xf0] sm:$0xff] %vm580, %v2792
      %2921 = vst.msk [vmem:[%s258 + $0xf8] sm:$0xff] %vm580, %v2793
      %2922 = vst.msk [vmem:[%s258 + $0x100] sm:$0xff] %vm580, %v2794
      %2923 = vst.msk [vmem:[%s258 + $0x108] sm:$0xff] %vm580, %v2795
      %2924 = vst.msk [vmem:[%s258 + $0x110] sm:$0xff] %vm580, %v2796
      %2925 = vst.msk [vmem:[%s258 + $0x118] sm:$0xff] %vm580, %v2797
      %2926 = vst.msk [vmem:[%s258 + $0x120] sm:$0xff] %vm580, %v2798
      %2927 = vst.msk [vmem:[%s258 + $0x128] sm:$0xff] %vm580, %v2799
      %2928 = vst.msk [vmem:[%s258 + $0x130] sm:$0xff] %vm580, %v2800
      %2929 = vst.msk [vmem:[%s258 + $0x138] sm:$0xff] %vm580, %v2801
      %2930 = vst.msk [vmem:[%s258 + $0x140] sm:$0xff] %vm580, %v2802
      %2931 = vst.msk [vmem:[%s258 + $0x148] sm:$0xff] %vm580, %v2803
      %2932 = vst.msk [vmem:[%s258 + $0x150] sm:$0xff] %vm580, %v2804
      %2933 = vst.msk [vmem:[%s258 + $0x158] sm:$0xff] %vm580, %v2805
      %2934 = vst.msk [vmem:[%s258 + $0x160] sm:$0xff] %vm580, %v2806
      %2935 = vst.msk [vmem:[%s258 + $0x168] sm:$0xff] %vm580, %v2807
      %2936 = vst.msk [vmem:[%s258 + $0x170] sm:$0xff] %vm580, %v2808
      %2937 = vst.msk [vmem:[%s258 + $0x178] sm:$0xff] %vm580, %v2809
      %2938 = vst.msk [vmem:[%s258 + $0x180] sm:$0xff] %vm580, %v2810
      %2939 = vst.msk [vmem:[%s258 + $0x188] sm:$0xff] %vm580, %v2811
      %2940 = vst.msk [vmem:[%s258 + $0x190] sm:$0xff] %vm580, %v2812
      %2941 = vst.msk [vmem:[%s258 + $0x198] sm:$0xff] %vm580, %v2813
      %2942 = vst.msk [vmem:[%s258 + $0x1a0] sm:$0xff] %vm580, %v2814
      %2943 = vst.msk [vmem:[%s258 + $0x1a8] sm:$0xff] %vm580, %v2815
      %2944 = vst.msk [vmem:[%s258 + $0x1b0] sm:$0xff] %vm580, %v2816
      %2945 = vst.msk [vmem:[%s258 + $0x1b8] sm:$0xff] %vm580, %v2817
      %2946 = vst.msk [vmem:[%s258 + $0x1c0] sm:$0xff] %vm580, %v2818
      %2947 = vst.msk [vmem:[%s258 + $0x1c8] sm:$0xff] %vm580, %v2819
      %2948 = vst.msk [vmem:[%s258 + $0x1d0] sm:$0xff] %vm580, %v2820
      %2949 = vst.msk [vmem:[%s258 + $0x1d8] sm:$0xff] %vm580, %v2821
      %2950 = vst.msk [vmem:[%s258 + $0x1e0] sm:$0xff] %vm580, %v2822
      %2951 = vst.msk [vmem:[%s258 + $0x1e8] sm:$0xff] %vm580, %v2823
      %2952 = vst.msk [vmem:[%s258 + $0x1f0] sm:$0xff] %vm580, %v2824
      %2953 = vst.msk [vmem:[%s258 + $0x1f8] sm:$0xff] %vm580, %v2825
      %2954 = vst.msk [vmem:[%s258 + $0x200] sm:$0xff] %vm580, %v2826
      %2955 = vst.msk [vmem:[%s258 + $0x208] sm:$0xff] %vm580, %v2827
      %2956 = vst.msk [vmem:[%s258 + $0x210] sm:$0xff] %vm580, %v2828
      %2957 = vst.msk [vmem:[%s258 + $0x218] sm:$0xff] %vm580, %v2829
      %2958 = vst.msk [vmem:[%s258 + $0x220] sm:$0xff] %vm580, %v2830
      %2959 = vst.msk [vmem:[%s258 + $0x228] sm:$0xff] %vm580, %v2831
      %2960 = vst.msk [vmem:[%s258 + $0x230] sm:$0xff] %vm580, %v2832
      %2961 = vst.msk [vmem:[%s258 + $0x238] sm:$0xff] %vm580, %v2833
      %2962 = vst.msk [vmem:[%s258 + $0x240] sm:$0xff] %vm580, %v2834
      %2963 = vst.msk [vmem:[%s258 + $0x248] sm:$0xff] %vm580, %v2835
      %2964 = vst.msk [vmem:[%s258 + $0x250] sm:$0xff] %vm580, %v2836
      %2965 = vst.msk [vmem:[%s258 + $0x258] sm:$0xff] %vm580, %v2837
      %2966 = vst.msk [vmem:[%s258 + $0x260] sm:$0xff] %vm580, %v2838
      %2967 = vst.msk [vmem:[%s258 + $0x268] sm:$0xff] %vm580, %v2839
      %2968 = vst.msk [vmem:[%s258 + $0x270] sm:$0xff] %vm580, %v2840
      %2969 = vst.msk [vmem:[%s258 + $0x278] sm:$0xff] %vm580, %v2841
      %2970 = vst.msk [vmem:[%s258 + $0x280] sm:$0xff] %vm580, %v2842
      %2971 = vst.msk [vmem:[%s258 + $0x288] sm:$0xff] %vm580, %v2843
      %2972 = vst.msk [vmem:[%s258 + $0x290] sm:$0xff] %vm580, %v2844
      %2973 = vst.msk [vmem:[%s258 + $0x298] sm:$0xff] %vm580, %v2845
      %2974 = vst.msk [vmem:[%s258 + $0x2a0] sm:$0xff] %vm580, %v2846
      %2975 = vst.msk [vmem:[%s258 + $0x2a8] sm:$0xff] %vm580, %v2847
      %2976 = vst.msk [vmem:[%s258 + $0x2b0] sm:$0xff] %vm580, %v2848
      %2977 = vst.msk [vmem:[%s258 + $0x2b8] sm:$0xff] %vm580, %v2849
      %2978 = vst.msk [vmem:[%s258 + $0x2c0] sm:$0xff] %vm580, %v2850
      %2979 = vst.msk [vmem:[%s258 + $0x2c8] sm:$0xff] %vm580, %v2851
      %2980 = vst.msk [vmem:[%s258 + $0x2d0] sm:$0xff] %vm580, %v2852
      %2981 = vst.msk [vmem:[%s258 + $0x2d8] sm:$0xff] %vm580, %v2853
      %2982 = vst.msk [vmem:[%s258 + $0x2e0] sm:$0xff] %vm580, %v2854
      %2983 = vst.msk [vmem:[%s258 + $0x2e8] sm:$0xff] %vm580, %v2855
      %2984 = vst.msk [vmem:[%s258 + $0x2f0] sm:$0xff] %vm580, %v2856
      %2985 = vst.msk [vmem:[%s258 + $0x2f8] sm:$0xff] %vm580, %v2857
      %2986 = vst.msk [vmem:[%s258 + $0x300] sm:$0xff] %vm580, %v2858
      %2987 = vst.msk [vmem:[%s258 + $0x308] sm:$0xff] %vm580, %v2859
      %2988 = vst.msk [vmem:[%s258 + $0x310] sm:$0xff] %vm580, %v2860
      %2989 = vst.msk [vmem:[%s258 + $0x318] sm:$0xff] %vm580, %v2861
      %2990 = vst.msk [vmem:[%s258 + $0x320] sm:$0xff] %vm580, %v2862
      %2991 = vst.msk [vmem:[%s258 + $0x328] sm:$0xff] %vm580, %v2863
      %2992 = vst.msk [vmem:[%s258 + $0x330] sm:$0xff] %vm580, %v2864
      %2993 = vst.msk [vmem:[%s258 + $0x338] sm:$0xff] %vm580, %v2865
      %2994 = vst.msk [vmem:[%s258 + $0x340] sm:$0xff] %vm580, %v2866
      %2995 = vst.msk [vmem:[%s258 + $0x348] sm:$0xff] %vm580, %v2867
      %2996 = vst.msk [vmem:[%s258 + $0x350] sm:$0xff] %vm580, %v2868
      %2997 = vst.msk [vmem:[%s258 + $0x358] sm:$0xff] %vm580, %v2869
      %2998 = vst.msk [vmem:[%s258 + $0x360] sm:$0xff] %vm580, %v2870
      %2999 = vst.msk [vmem:[%s258 + $0x368] sm:$0xff] %vm580, %v2871
      %3000 = vst.msk [vmem:[%s258 + $0x370] sm:$0xff] %vm580, %v2872
      %3001 = vst.msk [vmem:[%s258 + $0x378] sm:$0xff] %vm580, %v2873
      %3002 = vst.msk [vmem:[%s258 + $0x380] sm:$0xff] %vm580, %v2874
      %3003 = vst.msk [vmem:[%s258 + $0x388] sm:$0xff] %vm580, %v2875
      %3004 = vst.msk [vmem:[%s258 + $0x390] sm:$0xff] %vm580, %v2876
      %3005 = vst.msk [vmem:[%s258 + $0x398] sm:$0xff] %vm580, %v2877
      %3006 = vst.msk [vmem:[%s258 + $0x3a0] sm:$0xff] %vm580, %v2878
      %3007 = vst.msk [vmem:[%s258 + $0x3a8] sm:$0xff] %vm580, %v2879
      %3008 = vst.msk [vmem:[%s258 + $0x3b0] sm:$0xff] %vm580, %v2880
      %3009 = vst.msk [vmem:[%s258 + $0x3b8] sm:$0xff] %vm580, %v2881
      %3010 = vst.msk [vmem:[%s258 + $0x3c0] sm:$0xff] %vm580, %v2882
      %3011 = vst.msk [vmem:[%s258 + $0x3c8] sm:$0xff] %vm580, %v2883
      %3012 = vst.msk [vmem:[%s258 + $0x3d0] sm:$0xff] %vm580, %v2884
      %3013 = vst.msk [vmem:[%s258 + $0x3d8] sm:$0xff] %vm580, %v2885
      %3014 = vst.msk [vmem:[%s258 + $0x3e0] sm:$0xff] %vm580, %v2886
      %3015 = vst.msk [vmem:[%s258 + $0x3e8] sm:$0xff] %vm580, %v2887
      %3016 = vst.msk [vmem:[%s258 + $0x3f0] sm:$0xff] %vm580, %v2888
      %3017 = vst.msk [vmem:[%s258 + $0x3f8] sm:$0xff] %vm580, %v2889
      %s3018 = smul.u32 2, %s17
      %p3019 = scmp.lt.s32.totalorder %s3018, 7
      %s3020 = scalar_select %p3019, %s3018, 7
      %s3021 = smul.addr %s3020, 64
      %s3022 = smul.addr %s3021, 8
      %s3023 = scalar_lea.vmem %s6, %s3022
      // Predicated region
      $region45: #{tpu_custom_call.1} parent=43 // pred_check
        %p3024 = pneg %p166
      $region46: #{tpu_custom_call.1} parent=43 // pred_check_branch
        %3026 = sbr.rel (%p3024) target = $region48
      $region47: #{tpu_custom_call.1} parent=43 // pred_region
        %s3027 = smul.u32 2, %s17
      $region48: #{tpu_custom_call.1} parent=43 // pred_fallthru
        _
    $region44: #{tpu_custom_call.1} parent=5 // pred_fallthru
      _
    %p3028 = scmp.le.s32.totalorder 2, %s12
    // Predicated region
    $region49: #{tpu_custom_call.1} parent=5 // pred_check
      %p3029 = pneg %p3028
    $region50: #{tpu_custom_call.1} parent=5 // pred_check_branch
      %3031 = sbr.rel (%p3029) target = $region52
    $region51: #{tpu_custom_call.1} parent=5 // pred_region
      %s3032 = ssub.s32 %s12, 2
      // Predicated region
      $region53: #{tpu_custom_call.1} parent=51 // pred_check
        %p3033 = pneg %p172
      $region54: #{tpu_custom_call.1} parent=51 // pred_check_branch
        %3035 = sbr.rel (%p3033) target = $region56
      $region55: #{tpu_custom_call.1} parent=51 // pred_region
        %s3036 = smul.u32 2, %s18
        %p3037 = scmp.lt.s32.totalorder %s3036, 7
        %s3038 = scalar_select %p3037, %s3036, 7
        %s3039 = smul.addr %s3038, 64
        %s3040 = smul.addr %s3039, 8
        %s3041 = scalar_lea.vmem %s6, %s3040
      $region56: #{tpu_custom_call.1} parent=51 // pred_fallthru
        _
    $region52: #{tpu_custom_call.1} parent=5 // pred_fallthru
      _
  $region6: #{tpu_custom_call.1} parent=0 // loop_footer
    %s16 = sadd.s32 1, %s12
  $region7: #{tpu_custom_call.1} parent=0 // loop_footer_branch
    %11 = sbr.rel target = $region3
  $region8: #{tpu_custom_call.1} parent=0 // loop_exit
    _

</llo_original>
